<compile_context>
chip_gen: v7x
topology: tpu7x:2x2x1
jax: 0.10.0
libtpu: 0.0.40
codegen_flags: <defaults>
</compile_context>

<pallas_src>
import functools

import jax
import jax.numpy as jnp
from jax.experimental import pallas as pl
from jax.experimental.pallas import tpu as pltpu

BN_EPS = 1e-5

_PACK_ROWS = 152      # >= 150, multiple of 8 (sublane tile)
_W1_COLS = 15         # pk columns 0:15  -> fc1 weight [150, 15]
_VEC_COL0 = 15        # pk columns 15:23 -> per-feature vectors (8 columns)
_PACK_COLS = 24       # 15 + 8 padded to 24 (lane tile pads to 128 anyway)

# per-feature vector column indices (relative to _VEC_COL0)
_G1, _B1, _G2, _B2, _G3, _B3, _W4, _B4 = range(8)


def _net_kernel(x_ref, pk_ref, w2_ref, w3_ref, o_ref, *, b_real):
    """Feature-major forward pass.

    x_ref:  [Bp, 15]   (batch on sublanes at the input; folded transpose below)
    pk_ref: [152, 24]  packed fc1 weight + per-feature vectors
    w2_ref: [100, 150] fc2 weight (native PyTorch [out, in])
    w3_ref: [50, 100]  fc3 weight
    o_ref:  [1, Bp]    lane-dense output
    b_real: real (unpadded) batch size, static.
    """
    b_pad = x_ref.shape[0]
    inv_b = 1.0 / float(b_real)

    P = pk_ref[...]                                               # [152, 24]

    # Lane mask over the real batch (padded columns excluded from BN stats).
    if b_real < b_pad:
        lane = jax.lax.broadcasted_iota(jnp.int32, (1, b_pad), 1)
        mask = (lane < b_real).astype(jnp.float32)                # [1, Bp]
    else:
        mask = None

    def bn_elu(h, gidx, bidx):
        # h: [F, Bp] (features on sublanes, batch on lanes)
        f = h.shape[0]
        g = P[:f, _VEC_COL0 + gidx:_VEC_COL0 + gidx + 1]          # [F, 1]
        b = P[:f, _VEC_COL0 + bidx:_VEC_COL0 + bidx + 1]          # [F, 1]
        # Training-mode BatchNorm1d: per-feature batch mean + biased variance,
        # computed over the real batch only (two-pass, matches the reference).
        hm = h if mask is None else h * mask
        mean = jnp.sum(hm, axis=-1, keepdims=True) * inv_b        # [F, 1]
        hc = h - mean                                             # centered
        hcm = hc if mask is None else hc * mask
        var = jnp.sum(hcm * hcm, axis=-1, keepdims=True) * inv_b  # [F, 1]
        # Reassociated affine: fold gamma into the [F,1] scale (saves one
        # full-width [F,Bp] multiply per layer).
        scale = g * jax.lax.rsqrt(var + BN_EPS)                   # [F, 1]
        hn = hc * scale + b
        # ELU (alpha = 1.0); positive-branch exp is selected away.
        return jnp.where(hn > 0, hn, jnp.exp(hn) - 1.0)

    # fc1: contract the shared 15-dim axis directly (transpose folded in).
    w1 = P[:150, :_W1_COLS]                                       # [150, 15]
    h = jax.lax.dot_general(w1, x_ref[...],
                            dimension_numbers=(((1,), (1,)), ((), ())),
                            preferred_element_type=jnp.float32)   # [150, Bp]
    h = bn_elu(h, _G1, _B1)
    h = jnp.dot(w2_ref[...], h, preferred_element_type=jnp.float32)   # [100, Bp]
    h = bn_elu(h, _G2, _B2)
    h = jnp.dot(w3_ref[...], h, preferred_element_type=jnp.float32)   # [50, Bp]
    h = bn_elu(h, _G3, _B3)

    # fc4 (50 -> 1): VPU multiply + sublane reduce; lane-dense [1, Bp] result.
    w4 = P[:50, _VEC_COL0 + _W4:_VEC_COL0 + _W4 + 1]              # [50, 1]
    b4 = P[0:1, _VEC_COL0 + _B4:_VEC_COL0 + _B4 + 1]              # [1, 1]
    h4 = jnp.sum(h * w4, axis=0, keepdims=True) + b4              # [1, Bp]

    # Exact sigmoid (approx reciprocal would endanger the 1e-5 tolerance).
    o_ref[...] = 1.0 / (1.0 + jnp.exp(-h4))


def prepare_params(params):
    """One-time parameter packing (hoisted out of the per-call path).

    Weights stay in native PyTorch [out, in] layout.  fc1-3 biases are
    intentionally dropped (no-ops before training-mode BatchNorm).  fc1's
    weight and every per-feature vector share a single [152, 24] buffer.
    """
    def col(v):
        v = jnp.asarray(v, jnp.float32).reshape(-1)
        return jnp.pad(v, (0, _PACK_ROWS - v.shape[0]))

    w1 = jnp.asarray(params["w1"], jnp.float32)                   # [150, 15]
    w1p = jnp.pad(w1, ((0, _PACK_ROWS - w1.shape[0]), (0, 0)))    # [152, 15]
    vecs = jnp.stack(
        [
            col(params["g1"]), col(params["be1"]),
            col(params["g2"]), col(params["be2"]),
            col(params["g3"]), col(params["be3"]),
            col(params["w4"]), col(params["b4"]),
        ],
        axis=1,
    )                                                             # [152, 8]
    pk = jnp.concatenate([w1p, vecs], axis=1)                     # [152, 23]
    pk = jnp.pad(pk, ((0, 0), (0, _PACK_COLS - pk.shape[1])))     # [152, 24]

    return {
        "pk": pk,
        "w2": jnp.asarray(params["w2"], jnp.float32),             # [100, 150]
        "w3": jnp.asarray(params["w3"], jnp.float32),             # [50, 100]
    }


def net_forward(x, prepped, *, lane_major_output=False):
    """x: [B, 15] float32.  prepped: output of prepare_params().

    Returns [B, 1] (PyTorch layout) by default, or the kernel-native
    lane-dense [1, B] when lane_major_output=True (skips the final relayout).
    """
    B = x.shape[0]
    b_pad = ((B + 127) // 128) * 128          # batch on the lane axis
    x = x.astype(jnp.float32)
    if b_pad != B:
        x = jnp.pad(x, ((0, b_pad - B), (0, 0)))

    vmem = pl.BlockSpec(memory_space=pltpu.MemorySpace.VMEM)
    # ~220 KB of resident weights + a few KB per batch column of live [F, Bp]
    # intermediates; clamp so it stays below v7x's 64 MiB physical VMEM.
    vmem_limit = int(min(64 * 1024 * 1024,
                         max(16 * 1024 * 1024, 4 * 1024 * 1024 + b_pad * 4096)))

    out = pl.pallas_call(
        functools.partial(_net_kernel, b_real=B),
        out_shape=jax.ShapeDtypeStruct((1, b_pad), jnp.float32),
        in_specs=[vmem] * 4,
        out_specs=vmem,
        compiler_params=pltpu.CompilerParams(vmem_limit_bytes=vmem_limit),
    )(x, prepped["pk"], prepped["w2"], prepped["w3"])

    out = out[:, :B]                          # [1, B] lane-dense
    if lane_major_output:
        return out
    return out.reshape(B, 1)                  # match nn.Module output layout


# ----------------------------------------------------------------------------
# PyTorch-equivalent initialization + pure-JAX reference for validation.
# ----------------------------------------------------------------------------

def _kaiming_uniform(key, fan_out, fan_in, gain):
    bound = gain * (3.0 / fan_in) ** 0.5
    return jax.random.uniform(key, (fan_out, fan_in), jnp.float32, -bound, bound)


def init_params(key):
    ks = jax.random.split(key, 8)
    gain_relu = 2.0 ** 0.5   # kaiming_uniform_ default (leaky_relu, a=0)
    gain_sig = 1.0           # nonlinearity='sigmoid'

    def bias(k, fan_in, n):
        b = 1.0 / (fan_in ** 0.5)
        return jax.random.uniform(k, (n,), jnp.float32, -b, b)

    return {
        "w1": _kaiming_uniform(ks[0], 150, 15, gain_relu),
        "b1": bias(ks[1], 15, 150),
        "w2": _kaiming_uniform(ks[2], 100, 150, gain_relu),
        "b2": bias(ks[3], 150, 100),
        "w3": _kaiming_uniform(ks[4], 50, 100, gain_relu),
        "b3": bias(ks[5], 100, 50),
        "w4": _kaiming_uniform(ks[6], 1, 50, gain_sig),
        "b4": bias(ks[7], 50, 1),
        # BatchNorm affine params (PyTorch init: weight=1, bias=0)
        "g1": jnp.ones((150,), jnp.float32), "be1": jnp.zeros((150,), jnp.float32),
        "g2": jnp.ones((100,), jnp.float32), "be2": jnp.zeros((100,), jnp.float32),
        "g3": jnp.ones((50,), jnp.float32), "be3": jnp.zeros((50,), jnp.float32),
    }


def _reference(x, p):
    """Pure-JAX mirror of the PyTorch forward (training-mode BN, with biases)."""
    def bn_elu(h, g, b):
        m = jnp.mean(h, axis=0, keepdims=True)
        v = jnp.mean((h - m) ** 2, axis=0, keepdims=True)
        hn = (h - m) / jnp.sqrt(v + BN_EPS) * g + b
        return jnp.where(hn > 0, hn, jnp.exp(hn) - 1.0)

    h = x @ p["w1"].T + p["b1"]
    h = bn_elu(h, p["g1"], p["be1"])
    h = h @ p["w2"].T + p["b2"]
    h = bn_elu(h, p["g2"], p["be2"])
    h = h @ p["w3"].T + p["b3"]
    h = bn_elu(h, p["g3"], p["be3"])
    h = h @ p["w4"].T + p["b4"]
    return jax.nn.sigmoid(h)


if __name__ == "__main__":
    key = jax.random.PRNGKey(0)
    k_x, k_p = jax.random.split(key)

    B = 8  # batch > 1 so training-mode BatchNorm is well-defined
    x = jax.random.normal(k_x, (B, 15), jnp.float32)
    params = init_params(k_p)
    prepped = prepare_params(params)   # one-time packing, hoisted out of the call

    out = net_forward(x, prepped)
    out = jax.block_until_ready(out)

    ref = _reference(x, params)
    assert out.shape == (B, 1)
    assert jnp.allclose(out, ref, atol=1e-5, rtol=1e-5), "mismatch vs reference"

    print("KERNEL_OK")
</pallas_src>

<mosaic_0001>
module attributes {stable_mosaic.version = 11 : i64} {
  func.func @_net_kernel(%arg0: memref<128x15xf32, #tpu.memory_space<vmem>>, %arg1: memref<152x24xf32, #tpu.memory_space<vmem>>, %arg2: memref<100x150xf32, #tpu.memory_space<vmem>>, %arg3: memref<50x100xf32, #tpu.memory_space<vmem>>, %arg4: memref<1x128xf32, #tpu.memory_space<vmem>>) attributes {dimension_semantics = [], scalar_prefetch = 0 : i64, scratch_operands = 0 : i64, tpu.core_type = #tpu.core_type<tc>} {
    %c0 = arith.constant 0 : index
    %c0_0 = arith.constant 0 : index
    %0 = vector.load %arg1[%c0, %c0_0] : memref<152x24xf32, #tpu.memory_space<vmem>>, vector<152x24xf32>
    %1 = tpu.iota {dimensions = array<i32: 1>} : vector<1x128xi32>
    %c8_i32 = arith.constant 8 : i32
    %2 = vector.broadcast %c8_i32 : i32 to vector<1x128xi32>
    %3 = arith.cmpi slt, %1, %2 : vector<1x128xi32>
    %4 = arith.extui %3 : vector<1x128xi1> to vector<1x128xi32>
    %5 = arith.sitofp %4 : vector<1x128xi32> to vector<1x128xf32>
    %6 = vector.extract_strided_slice %0 {offsets = [0, 0], sizes = [150, 15], strides = [1, 1]} : vector<152x24xf32> to vector<150x15xf32>
    %c0_1 = arith.constant 0 : index
    %c0_2 = arith.constant 0 : index
    %7 = vector.load %arg0[%c0_1, %c0_2] : memref<128x15xf32, #tpu.memory_space<vmem>>, vector<128x15xf32>
    %cst = arith.constant dense<0.000000e+00> : vector<150x128xf32>
    %8 = tpu.matmul %6, %7, %cst {dimension_numbers = #tpu.dot_dimension_numbers<[1], [1], [0], [0], [0, 0, 1, 0], [], []>} : vector<150x15xf32>, vector<128x15xf32>, vector<150x128xf32> -> vector<150x128xf32>
    %9 = vector.extract_strided_slice %0 {offsets = [0, 15], sizes = [150, 1], strides = [1, 1]} : vector<152x24xf32> to vector<150x1xf32>
    %10 = vector.extract_strided_slice %0 {offsets = [0, 16], sizes = [150, 1], strides = [1, 1]} : vector<152x24xf32> to vector<150x1xf32>
    %11 = vector.broadcast %5 : vector<1x128xf32> to vector<150x128xf32>
    %12 = arith.mulf %8, %11 : vector<150x128xf32>
    %cst_3 = arith.constant dense<0.000000e+00> : vector<150xf32>
    %13 = vector.multi_reduction <add>, %12, %cst_3 [1] : vector<150x128xf32> to vector<150xf32>
    %14 = vector.shape_cast %13 : vector<150xf32> to vector<150x1xf32>
    %cst_4 = arith.constant 1.250000e-01 : f32
    %15 = vector.broadcast %cst_4 : f32 to vector<150x1xf32>
    %16 = arith.mulf %14, %15 : vector<150x1xf32>
    %17 = vector.broadcast %16 : vector<150x1xf32> to vector<150x128xf32>
    %18 = arith.subf %8, %17 : vector<150x128xf32>
    %19 = vector.broadcast %5 : vector<1x128xf32> to vector<150x128xf32>
    %20 = arith.mulf %18, %19 : vector<150x128xf32>
    %21 = arith.mulf %20, %20 : vector<150x128xf32>
    %cst_5 = arith.constant dense<0.000000e+00> : vector<150xf32>
    %22 = vector.multi_reduction <add>, %21, %cst_5 [1] : vector<150x128xf32> to vector<150xf32>
    %23 = vector.shape_cast %22 : vector<150xf32> to vector<150x1xf32>
    %cst_6 = arith.constant 1.250000e-01 : f32
    %24 = vector.broadcast %cst_6 : f32 to vector<150x1xf32>
    %25 = arith.mulf %23, %24 : vector<150x1xf32>
    %cst_7 = arith.constant 9.99999974E-6 : f32
    %26 = vector.broadcast %cst_7 : f32 to vector<150x1xf32>
    %27 = arith.addf %25, %26 : vector<150x1xf32>
    %28 = math.rsqrt %27 : vector<150x1xf32>
    %29 = arith.mulf %9, %28 : vector<150x1xf32>
    %30 = vector.broadcast %29 : vector<150x1xf32> to vector<150x128xf32>
    %31 = arith.mulf %18, %30 : vector<150x128xf32>
    %32 = vector.broadcast %10 : vector<150x1xf32> to vector<150x128xf32>
    %33 = arith.addf %31, %32 : vector<150x128xf32>
    %cst_8 = arith.constant 0.000000e+00 : f32
    %34 = vector.broadcast %cst_8 : f32 to vector<150x128xf32>
    %35 = arith.cmpf ogt, %33, %34 : vector<150x128xf32>
    %36 = math.exp %33 : vector<150x128xf32>
    %cst_9 = arith.constant 1.000000e+00 : f32
    %37 = vector.broadcast %cst_9 : f32 to vector<150x128xf32>
    %38 = arith.subf %36, %37 : vector<150x128xf32>
    %39 = arith.select %35, %33, %38 : vector<150x128xi1>, vector<150x128xf32>
    %c0_10 = arith.constant 0 : index
    %c0_11 = arith.constant 0 : index
    %40 = vector.load %arg2[%c0_10, %c0_11] : memref<100x150xf32, #tpu.memory_space<vmem>>, vector<100x150xf32>
    %cst_12 = arith.constant dense<0.000000e+00> : vector<100x128xf32>
    %41 = tpu.matmul %40, %39, %cst_12 {dimension_numbers = #tpu.dot_dimension_numbers<[1], [0], [0], [1], [0, 0, 1, 1], [], []>} : vector<100x150xf32>, vector<150x128xf32>, vector<100x128xf32> -> vector<100x128xf32>
    %42 = vector.extract_strided_slice %0 {offsets = [0, 17], sizes = [100, 1], strides = [1, 1]} : vector<152x24xf32> to vector<100x1xf32>
    %43 = vector.extract_strided_slice %0 {offsets = [0, 18], sizes = [100, 1], strides = [1, 1]} : vector<152x24xf32> to vector<100x1xf32>
    %44 = vector.broadcast %5 : vector<1x128xf32> to vector<100x128xf32>
    %45 = arith.mulf %41, %44 : vector<100x128xf32>
    %cst_13 = arith.constant dense<0.000000e+00> : vector<100xf32>
    %46 = vector.multi_reduction <add>, %45, %cst_13 [1] : vector<100x128xf32> to vector<100xf32>
    %47 = vector.shape_cast %46 : vector<100xf32> to vector<100x1xf32>
    %cst_14 = arith.constant 1.250000e-01 : f32
    %48 = vector.broadcast %cst_14 : f32 to vector<100x1xf32>
    %49 = arith.mulf %47, %48 : vector<100x1xf32>
    %50 = vector.broadcast %49 : vector<100x1xf32> to vector<100x128xf32>
    %51 = arith.subf %41, %50 : vector<100x128xf32>
    %52 = vector.broadcast %5 : vector<1x128xf32> to vector<100x128xf32>
    %53 = arith.mulf %51, %52 : vector<100x128xf32>
    %54 = arith.mulf %53, %53 : vector<100x128xf32>
    %cst_15 = arith.constant dense<0.000000e+00> : vector<100xf32>
    %55 = vector.multi_reduction <add>, %54, %cst_15 [1] : vector<100x128xf32> to vector<100xf32>
    %56 = vector.shape_cast %55 : vector<100xf32> to vector<100x1xf32>
    %cst_16 = arith.constant 1.250000e-01 : f32
    %57 = vector.broadcast %cst_16 : f32 to vector<100x1xf32>
    %58 = arith.mulf %56, %57 : vector<100x1xf32>
    %cst_17 = arith.constant 9.99999974E-6 : f32
    %59 = vector.broadcast %cst_17 : f32 to vector<100x1xf32>
    %60 = arith.addf %58, %59 : vector<100x1xf32>
    %61 = math.rsqrt %60 : vector<100x1xf32>
    %62 = arith.mulf %42, %61 : vector<100x1xf32>
    %63 = vector.broadcast %62 : vector<100x1xf32> to vector<100x128xf32>
    %64 = arith.mulf %51, %63 : vector<100x128xf32>
    %65 = vector.broadcast %43 : vector<100x1xf32> to vector<100x128xf32>
    %66 = arith.addf %64, %65 : vector<100x128xf32>
    %cst_18 = arith.constant 0.000000e+00 : f32
    %67 = vector.broadcast %cst_18 : f32 to vector<100x128xf32>
    %68 = arith.cmpf ogt, %66, %67 : vector<100x128xf32>
    %69 = math.exp %66 : vector<100x128xf32>
    %cst_19 = arith.constant 1.000000e+00 : f32
    %70 = vector.broadcast %cst_19 : f32 to vector<100x128xf32>
    %71 = arith.subf %69, %70 : vector<100x128xf32>
    %72 = arith.select %68, %66, %71 : vector<100x128xi1>, vector<100x128xf32>
    %c0_20 = arith.constant 0 : index
    %c0_21 = arith.constant 0 : index
    %73 = vector.load %arg3[%c0_20, %c0_21] : memref<50x100xf32, #tpu.memory_space<vmem>>, vector<50x100xf32>
    %cst_22 = arith.constant dense<0.000000e+00> : vector<50x128xf32>
    %74 = tpu.matmul %73, %72, %cst_22 {dimension_numbers = #tpu.dot_dimension_numbers<[1], [0], [0], [1], [0, 0, 1, 1], [], []>} : vector<50x100xf32>, vector<100x128xf32>, vector<50x128xf32> -> vector<50x128xf32>
    %75 = vector.extract_strided_slice %0 {offsets = [0, 19], sizes = [50, 1], strides = [1, 1]} : vector<152x24xf32> to vector<50x1xf32>
    %76 = vector.extract_strided_slice %0 {offsets = [0, 20], sizes = [50, 1], strides = [1, 1]} : vector<152x24xf32> to vector<50x1xf32>
    %77 = vector.broadcast %5 : vector<1x128xf32> to vector<50x128xf32>
    %78 = arith.mulf %74, %77 : vector<50x128xf32>
    %cst_23 = arith.constant dense<0.000000e+00> : vector<50xf32>
    %79 = vector.multi_reduction <add>, %78, %cst_23 [1] : vector<50x128xf32> to vector<50xf32>
    %80 = vector.shape_cast %79 : vector<50xf32> to vector<50x1xf32>
    %cst_24 = arith.constant 1.250000e-01 : f32
    %81 = vector.broadcast %cst_24 : f32 to vector<50x1xf32>
    %82 = arith.mulf %80, %81 : vector<50x1xf32>
    %83 = vector.broadcast %82 : vector<50x1xf32> to vector<50x128xf32>
    %84 = arith.subf %74, %83 : vector<50x128xf32>
    %85 = vector.broadcast %5 : vector<1x128xf32> to vector<50x128xf32>
    %86 = arith.mulf %84, %85 : vector<50x128xf32>
    %87 = arith.mulf %86, %86 : vector<50x128xf32>
    %cst_25 = arith.constant dense<0.000000e+00> : vector<50xf32>
    %88 = vector.multi_reduction <add>, %87, %cst_25 [1] : vector<50x128xf32> to vector<50xf32>
    %89 = vector.shape_cast %88 : vector<50xf32> to vector<50x1xf32>
    %cst_26 = arith.constant 1.250000e-01 : f32
    %90 = vector.broadcast %cst_26 : f32 to vector<50x1xf32>
    %91 = arith.mulf %89, %90 : vector<50x1xf32>
    %cst_27 = arith.constant 9.99999974E-6 : f32
    %92 = vector.broadcast %cst_27 : f32 to vector<50x1xf32>
    %93 = arith.addf %91, %92 : vector<50x1xf32>
    %94 = math.rsqrt %93 : vector<50x1xf32>
    %95 = arith.mulf %75, %94 : vector<50x1xf32>
    %96 = vector.broadcast %95 : vector<50x1xf32> to vector<50x128xf32>
    %97 = arith.mulf %84, %96 : vector<50x128xf32>
    %98 = vector.broadcast %76 : vector<50x1xf32> to vector<50x128xf32>
    %99 = arith.addf %97, %98 : vector<50x128xf32>
    %cst_28 = arith.constant 0.000000e+00 : f32
    %100 = vector.broadcast %cst_28 : f32 to vector<50x128xf32>
    %101 = arith.cmpf ogt, %99, %100 : vector<50x128xf32>
    %102 = math.exp %99 : vector<50x128xf32>
    %cst_29 = arith.constant 1.000000e+00 : f32
    %103 = vector.broadcast %cst_29 : f32 to vector<50x128xf32>
    %104 = arith.subf %102, %103 : vector<50x128xf32>
    %105 = arith.select %101, %99, %104 : vector<50x128xi1>, vector<50x128xf32>
    %106 = vector.extract_strided_slice %0 {offsets = [0, 21], sizes = [50, 1], strides = [1, 1]} : vector<152x24xf32> to vector<50x1xf32>
    %107 = vector.extract_strided_slice %0 {offsets = [0, 22], sizes = [1, 1], strides = [1, 1]} : vector<152x24xf32> to vector<1x1xf32>
    %108 = vector.broadcast %106 : vector<50x1xf32> to vector<50x128xf32>
    %109 = arith.mulf %105, %108 : vector<50x128xf32>
    %cst_30 = arith.constant dense<0.000000e+00> : vector<128xf32>
    %110 = vector.multi_reduction <add>, %109, %cst_30 [0] : vector<50x128xf32> to vector<128xf32>
    %111 = vector.shape_cast %110 : vector<128xf32> to vector<1x128xf32>
    %112 = vector.broadcast %107 : vector<1x1xf32> to vector<1x128xf32>
    %113 = arith.addf %111, %112 : vector<1x128xf32>
    %cst_31 = arith.constant 0.000000e+00 : f32
    %114 = vector.broadcast %cst_31 : f32 to vector<1x128xf32>
    %115 = arith.subf %114, %113 : vector<1x128xf32>
    %116 = math.exp %115 : vector<1x128xf32>
    %cst_32 = arith.constant 1.000000e+00 : f32
    %117 = vector.broadcast %cst_32 : f32 to vector<1x128xf32>
    %118 = arith.addf %117, %116 : vector<1x128xf32>
    %cst_33 = arith.constant 1.000000e+00 : f32
    %119 = vector.broadcast %cst_33 : f32 to vector<1x128xf32>
    %120 = arith.divf %119, %118 : vector<1x128xf32>
    %c0_34 = arith.constant 0 : index
    %c0_35 = arith.constant 0 : index
    %121 = vector.load %arg4[%c0_34, %c0_35] : memref<1x128xf32, #tpu.memory_space<vmem>>, vector<1x128xf32>
    tpu.vector_store %arg4[%c0_34, %c0_35], %120 {strides = array<i32>} : memref<1x128xf32, #tpu.memory_space<vmem>>, vector<1x128xf32>,
    return
  }
}

</mosaic_0001>

<llo_original>
// kernel: tpu_custom_call.1
$region0: #{tpu_custom_call.1}
  #allocation0 [shape = 'u32[]', space=smem, size = 0x4, offset = 0x4, fixed_abs, tag = 'smem constant byte address 0x4 - core index']
  #allocation1 [shape = 'u32[144,128]{1,0:T(1,128)}', space=vmem, size = 0x12000, scoped, tag = 'internal scratch']
  %s0 = inlined_call_operand.vmem [shape: f32[128,15], index: 0, kind: input, shape index: {}]
  %s1 = inlined_call_operand.vmem [shape: f32[152,24], index: 1, kind: input, shape index: {}]
  %s2 = inlined_call_operand.vmem [shape: f32[100,150], index: 2, kind: input, shape index: {}]
  %s3 = inlined_call_operand.vmem [shape: f32[50,100], index: 3, kind: input, shape index: {}]
  %s4 = inlined_call_operand.hbm [shape: f32[1,128], index: 4, kind: output, shape index: {}]
  %s5 = sld [smem:[#allocation0]]
  $region26: #{tpu_custom_call.1} parent=0
    _
  %s7 = ssub.s32 1, %s5
  %s8 = scalar_select 0, %s7, %s5
  $region1: #{tpu_custom_call.1} parent=0
    #allocation2 [shape = 'u8[512]{0}', space=vmem, size = 0x400, scoped, tag = 'output window, operand 0, single buffered']
    #allocation3 [shape = 's32[1]{0}', space=sflag, size = 0x4, scoped, tag = 'scoped memory for tpu_custom_call.1']
    %9 = vsyncpa [#allocation3], 0
    // Predicated region
    $region2: #{tpu_custom_call.1} parent=1 // pred_check
      _
    $region3: #{tpu_custom_call.1} parent=1 // pred_check_branch
      %11 = sbr.rel (0) target = $region5
    $region4: #{tpu_custom_call.1} parent=1 // pred_region
      _
    $region5: #{tpu_custom_call.1} parent=1 // pred_fallthru
      _
    // Predicated region
    $region6: #{tpu_custom_call.1} parent=1 // pred_check
      _
    $region7: #{tpu_custom_call.1} parent=1 // pred_check_branch
      %13 = sbr.rel (0) target = $region9
    $region8: #{tpu_custom_call.1} parent=1 // pred_region
      _
    $region9: #{tpu_custom_call.1} parent=1 // pred_fallthru
      _
    // Predicated region
    $region10: #{tpu_custom_call.1} parent=1 // pred_check
      _
    $region11: #{tpu_custom_call.1} parent=1 // pred_check_branch
      %15 = sbr.rel (0) target = $region13
    $region12: #{tpu_custom_call.1} parent=1 // pred_region
      _
    $region13: #{tpu_custom_call.1} parent=1 // pred_fallthru
      _
    // Predicated region
    $region14: #{tpu_custom_call.1} parent=1 // pred_check
      _
    $region15: #{tpu_custom_call.1} parent=1 // pred_check_branch
      %17 = sbr.rel (0) target = $region17
    $region16: #{tpu_custom_call.1} parent=1 // pred_region
      _
    $region17: #{tpu_custom_call.1} parent=1 // pred_fallthru
      _
    %v18 = vld [vmem:[%s1] sm:$0xff]
    %v19 = vld [vmem:[%s1 + $0x8] sm:$0xff]
    %v20 = vld [vmem:[%s1 + $0x10] sm:$0xff]
    %v21 = vld [vmem:[%s1 + $0x18] sm:$0xff]
    %v22 = vld [vmem:[%s1 + $0x20] sm:$0xff]
    %v23 = vld [vmem:[%s1 + $0x28] sm:$0xff]
    %v24 = vld [vmem:[%s1 + $0x30] sm:$0xff]
    %v25 = vld [vmem:[%s1 + $0x38] sm:$0xff]
    %v26 = vld [vmem:[%s1 + $0x40] sm:$0xff]
    %v27 = vld [vmem:[%s1 + $0x48] sm:$0xff]
    %v28 = vld [vmem:[%s1 + $0x50] sm:$0xff]
    %v29 = vld [vmem:[%s1 + $0x58] sm:$0xff]
    %v30 = vld [vmem:[%s1 + $0x60] sm:$0xff]
    %v31 = vld [vmem:[%s1 + $0x68] sm:$0xff]
    %v32 = vld [vmem:[%s1 + $0x70] sm:$0xff]
    %v33 = vld [vmem:[%s1 + $0x78] sm:$0xff]
    %v34 = vld [vmem:[%s1 + $0x80] sm:$0xff]
    %v35 = vld [vmem:[%s1 + $0x88] sm:$0xff]
    %v36 = vld [vmem:[%s1 + $0x90] sm:$0xff]
    %v37 = vlaneseq
    %v38 = vand.u32 %v37, 127
    %vm39 = vcmp.lt.s32.totalorder %v38, 8
    %v40 = vsel %vm39, 1, 0
    %v41 = vcvt.s32.f32 %v40
    %v42 = vld [vmem:[%s0] sm:$0xff]
    %v43 = vld [vmem:[%s0 + $0x8] sm:$0xff]
    %v44 = vld [vmem:[%s0 + $0x10] sm:$0xff]
    %v45 = vld [vmem:[%s0 + $0x18] sm:$0xff]
    %v46 = vld [vmem:[%s0 + $0x20] sm:$0xff]
    %v47 = vld [vmem:[%s0 + $0x28] sm:$0xff]
    %v48 = vld [vmem:[%s0 + $0x30] sm:$0xff]
    %v49 = vld [vmem:[%s0 + $0x38] sm:$0xff]
    %v50 = vld [vmem:[%s0 + $0x40] sm:$0xff]
    %v51 = vld [vmem:[%s0 + $0x48] sm:$0xff]
    %v52 = vld [vmem:[%s0 + $0x50] sm:$0xff]
    %v53 = vld [vmem:[%s0 + $0x58] sm:$0xff]
    %v54 = vld [vmem:[%s0 + $0x60] sm:$0xff]
    %v55 = vld [vmem:[%s0 + $0x68] sm:$0xff]
    %v56 = vld [vmem:[%s0 + $0x70] sm:$0xff]
    %v57 = vld [vmem:[%s0 + $0x78] sm:$0xff]
    %vm58 = vcmask 121856
    %v60 = vsel %vm58, %v18, 0
    %v63 = vsel %vm58, %v19, 0
    %v66 = vsel %vm58, %v20, 0
    %v69 = vsel %vm58, %v21, 0
    %v72 = vsel %vm58, %v22, 0
    %v75 = vsel %vm58, %v23, 0
    %v78 = vsel %vm58, %v24, 0
    %v81 = vsel %vm58, %v25, 0
    %v84 = vsel %vm58, %v26, 0
    %v87 = vsel %vm58, %v27, 0
    %v90 = vsel %vm58, %v28, 0
    %v93 = vsel %vm58, %v29, 0
    %v96 = vsel %vm58, %v30, 0
    %v99 = vsel %vm58, %v31, 0
    %v102 = vsel %vm58, %v32, 0
    %v105 = vsel %vm58, %v33, 0
    %v108 = vsel %vm58, %v34, 0
    %v111 = vsel %vm58, %v35, 0
    %v114 = vsel %vm58, %v36, 0
    %v117 = vsel %vm58, %v42, 0
    %v120 = vsel %vm58, %v43, 0
    %v123 = vsel %vm58, %v44, 0
    %v126 = vsel %vm58, %v45, 0
    %v129 = vsel %vm58, %v46, 0
    %v132 = vsel %vm58, %v47, 0
    %v135 = vsel %vm58, %v48, 0
    %v138 = vsel %vm58, %v49, 0
    %v141 = vsel %vm58, %v50, 0
    %v144 = vsel %vm58, %v51, 0
    %v147 = vsel %vm58, %v52, 0
    %v150 = vsel %vm58, %v53, 0
    %v153 = vsel %vm58, %v54, 0
    %v156 = vsel %vm58, %v55, 0
    %v159 = vsel %vm58, %v56, 0
    %v162 = vsel %vm58, %v57, 0
    %164 = vmatprep.subr.mxu0 0.0
    %165 = vmatpush1.xpose.msra.mxu0 %v117
    %166 = vmatprep.subr.mxu0 0.0
    %167 = vmatpush1.xpose.msra.mxu0 %v120
    %168 = vmatprep.subr.mxu0 0.0
    %169 = vmatpush1.xpose.msra.mxu0 %v123
    %170 = vmatprep.subr.mxu0 0.0
    %171 = vmatpush1.xpose.msra.mxu0 %v126
    %172 = vmatprep.subr.mxu0 0.0
    %173 = vmatpush1.xpose.msra.mxu0 %v129
    %174 = vmatprep.subr.mxu0 0.0
    %175 = vmatpush1.xpose.msra.mxu0 %v132
    %176 = vmatprep.subr.mxu0 0.0
    %177 = vmatpush1.xpose.msra.mxu0 %v135
    %178 = vmatprep.subr.mxu0 0.0
    %179 = vmatpush1.xpose.msra.mxu0 %v138
    %180 = vmatprep.subr.mxu0 0.0
    %181 = vmatpush1.xpose.msra.mxu0 %v141
    %182 = vmatprep.subr.mxu0 0.0
    %183 = vmatpush1.xpose.msra.mxu0 %v144
    %184 = vmatprep.subr.mxu0 0.0
    %185 = vmatpush1.xpose.msra.mxu0 %v147
    %186 = vmatprep.subr.mxu0 0.0
    %187 = vmatpush1.xpose.msra.mxu0 %v150
    %188 = vmatprep.subr.mxu0 0.0
    %189 = vmatpush1.xpose.msra.mxu0 %v153
    %190 = vmatprep.subr.mxu0 0.0
    %191 = vmatpush1.xpose.msra.mxu0 %v156
    %192 = vmatprep.subr.mxu0 0.0
    %193 = vmatpush1.xpose.msra.mxu0 %v159
    %194 = vmatprep.subr.mxu0 0.0
    %195 = vmatpush1.xpose.msra.mxu0 %v162
    %196 = vmatprep.subr.mxu0 0.0
    %197 = vmatpush1.xpose.msra.mxu0 0.0
    %198 = vmatprep.subr.mxu0 0.0
    %199 = vmatpush1.xpose.msra.mxu0 0.0
    %200 = vmatprep.subr.mxu0 0.0
    %201 = vmatpush1.xpose.msra.mxu0 0.0
    %202 = vmatprep.subr.mxu0 0.0
    %203 = vmatpush1.xpose.msra.mxu0 0.0
    %204 = vmatprep.subr.mxu0 0.0
    %205 = vmatpush1.xpose.msra.mxu0 0.0
    %206 = vmatprep.subr.mxu0 0.0
    %207 = vmatpush1.xpose.msra.mxu0 0.0
    %208 = vmatprep.subr.mxu0 0.0
    %209 = vmatpush1.xpose.msra.mxu0 0.0
    %210 = vmatprep.subr.mxu0 0.0
    %211 = vmatpush1.xpose.msra.mxu0 0.0
    %212 = vmatprep.subr.mxu0 0.0
    %213 = vmatpush1.xpose.msra.mxu0 0.0
    %214 = vmatprep.subr.mxu0 0.0
    %215 = vmatpush1.xpose.msra.mxu0 0.0
    %216 = vmatprep.subr.mxu0 0.0
    %217 = vmatpush1.xpose.msra.mxu0 0.0
    %218 = vmatprep.subr.mxu0 0.0
    %219 = vmatpush1.xpose.msra.mxu0 0.0
    %220 = vmatprep.subr.mxu0 0.0
    %221 = vmatpush1.xpose.msra.mxu0 0.0
    %222 = vmatprep.subr.mxu0 0.0
    %223 = vmatpush1.xpose.msra.mxu0 0.0
    %224 = vmatprep.subr.mxu0 0.0
    %225 = vmatpush1.xpose.msra.mxu0 0.0
    %226 = vmatprep.subr.mxu0 0.0
    %227 = vmatpush1.xpose.msra.mxu0 0.0
    %228 = vmatprep.mubr.f32.mxu0 0.0
    %229 = vmatmul.mubr.f32.gmra.mrb[0].mxu0 %v60
    %v230 = vpop.f32.mrb[0].mxu0
    %v231 = vadd.f32 0.0, %v230
    %v232 = vpop.f32.mrb[0].mxu0
    %233 = vmatprep.mubr.f32.mxu0 0.0
    %234 = vmatmul.mubr.f32.gmra.mrb[0].mxu0 %v63
    %v235 = vpop.f32.mrb[0].mxu0
    %v236 = vadd.f32 0.0, %v235
    %v237 = vpop.f32.mrb[0].mxu0
    %238 = vmatprep.mubr.f32.mxu0 0.0
    %239 = vmatmul.mubr.f32.gmra.mrb[0].mxu0 %v66
    %v240 = vpop.f32.mrb[0].mxu0
    %v241 = vadd.f32 0.0, %v240
    %v242 = vpop.f32.mrb[0].mxu0
    %243 = vmatprep.mubr.f32.mxu0 0.0
    %244 = vmatmul.mubr.f32.gmra.mrb[0].mxu0 %v69
    %v245 = vpop.f32.mrb[0].mxu0
    %v246 = vadd.f32 0.0, %v245
    %v247 = vpop.f32.mrb[0].mxu0
    %248 = vmatprep.mubr.f32.mxu0 0.0
    %249 = vmatmul.mubr.f32.gmra.mrb[0].mxu0 %v72
    %v250 = vpop.f32.mrb[0].mxu0
    %v251 = vadd.f32 0.0, %v250
    %v252 = vpop.f32.mrb[0].mxu0
    %253 = vmatprep.mubr.f32.mxu0 0.0
    %254 = vmatmul.mubr.f32.gmra.mrb[0].mxu0 %v75
    %v255 = vpop.f32.mrb[0].mxu0
    %v256 = vadd.f32 0.0, %v255
    %v257 = vpop.f32.mrb[0].mxu0
    %258 = vmatprep.mubr.f32.mxu0 0.0
    %259 = vmatmul.mubr.f32.gmra.mrb[0].mxu0 %v78
    %v260 = vpop.f32.mrb[0].mxu0
    %v261 = vadd.f32 0.0, %v260
    %v262 = vpop.f32.mrb[0].mxu0
    %263 = vmatprep.mubr.f32.mxu0 0.0
    %264 = vmatmul.mubr.f32.gmra.mrb[0].mxu0 %v81
    %v265 = vpop.f32.mrb[0].mxu0
    %v266 = vadd.f32 0.0, %v265
    %v267 = vpop.f32.mrb[0].mxu0
    %268 = vmatprep.mubr.f32.mxu0 0.0
    %269 = vmatmul.mubr.f32.gmra.mrb[0].mxu0 %v84
    %v270 = vpop.f32.mrb[0].mxu0
    %v271 = vadd.f32 0.0, %v270
    %v272 = vpop.f32.mrb[0].mxu0
    %273 = vmatprep.mubr.f32.mxu0 0.0
    %274 = vmatmul.mubr.f32.gmra.mrb[0].mxu0 %v87
    %v275 = vpop.f32.mrb[0].mxu0
    %v276 = vadd.f32 0.0, %v275
    %v277 = vpop.f32.mrb[0].mxu0
    %278 = vmatprep.mubr.f32.mxu0 0.0
    %279 = vmatmul.mubr.f32.gmra.mrb[0].mxu0 %v90
    %v280 = vpop.f32.mrb[0].mxu0
    %v281 = vadd.f32 0.0, %v280
    %v282 = vpop.f32.mrb[0].mxu0
    %283 = vmatprep.mubr.f32.mxu0 0.0
    %284 = vmatmul.mubr.f32.gmra.mrb[0].mxu0 %v93
    %v285 = vpop.f32.mrb[0].mxu0
    %v286 = vadd.f32 0.0, %v285
    %v287 = vpop.f32.mrb[0].mxu0
    %288 = vmatprep.mubr.f32.mxu0 0.0
    %289 = vmatmul.mubr.f32.gmra.mrb[0].mxu0 %v96
    %v290 = vpop.f32.mrb[0].mxu0
    %v291 = vadd.f32 0.0, %v290
    %v292 = vpop.f32.mrb[0].mxu0
    %293 = vmatprep.mubr.f32.mxu0 0.0
    %294 = vmatmul.mubr.f32.gmra.mrb[0].mxu0 %v99
    %v295 = vpop.f32.mrb[0].mxu0
    %v296 = vadd.f32 0.0, %v295
    %v297 = vpop.f32.mrb[0].mxu0
    %298 = vmatprep.mubr.f32.mxu0 0.0
    %299 = vmatmul.mubr.f32.gmra.mrb[0].mxu0 %v102
    %v300 = vpop.f32.mrb[0].mxu0
    %v301 = vadd.f32 0.0, %v300
    %v302 = vpop.f32.mrb[0].mxu0
    %303 = vmatprep.mubr.f32.mxu0 0.0
    %304 = vmatmul.mubr.f32.gmra.mrb[0].mxu0 %v105
    %v305 = vpop.f32.mrb[0].mxu0
    %v306 = vadd.f32 0.0, %v305
    %v307 = vpop.f32.mrb[0].mxu0
    %308 = vmatprep.mubr.f32.mxu0 0.0
    %309 = vmatmul.mubr.f32.gmra.mrb[0].mxu0 %v108
    %v310 = vpop.f32.mrb[0].mxu0
    %v311 = vadd.f32 0.0, %v310
    %v312 = vpop.f32.mrb[0].mxu0
    %313 = vmatprep.mubr.f32.mxu0 0.0
    %314 = vmatmul.mubr.f32.gmra.mrb[0].mxu0 %v111
    %v315 = vpop.f32.mrb[0].mxu0
    %v316 = vadd.f32 0.0, %v315
    %v317 = vpop.f32.mrb[0].mxu0
    %318 = vmatprep.mubr.f32.mxu0 0.0
    %319 = vmatmul.mubr.f32.gmra.mrb[0].mxu0 %v114
    %v320 = vpop.f32.mrb[0].mxu0
    %v321 = vadd.f32 0.0, %v320
    %v322 = vpop.f32.mrb[0].mxu0
    %323 = vdwg.mxu0
    %v324 = vmul.f32 %v231, %v41
    %v325 = vmul.f32 %v236, %v41
    %v326 = vmul.f32 %v241, %v41
    %v327 = vmul.f32 %v246, %v41
    %v328 = vmul.f32 %v251, %v41
    %v329 = vmul.f32 %v256, %v41
    %v330 = vmul.f32 %v261, %v41
    %v331 = vmul.f32 %v266, %v41
    %v332 = vmul.f32 %v271, %v41
    %v333 = vmul.f32 %v276, %v41
    %v334 = vmul.f32 %v281, %v41
    %v335 = vmul.f32 %v286, %v41
    %v336 = vmul.f32 %v291, %v41
    %v337 = vmul.f32 %v296, %v41
    %v338 = vmul.f32 %v301, %v41
    %v339 = vmul.f32 %v306, %v41
    %v340 = vmul.f32 %v311, %v41
    %v341 = vmul.f32 %v316, %v41
    %v342 = vmul.f32 %v321, %v41
    %343 = vadd.xlane.f32.xlu0 %v324
    %v344 = vpop.xlane.xlu0 %343
    %345 = vadd.xlane.f32.xlu0 %v325
    %v346 = vpop.xlane.xlu0 %345
    %347 = vadd.xlane.f32.xlu0 %v326
    %v348 = vpop.xlane.xlu0 %347
    %349 = vadd.xlane.f32.xlu0 %v327
    %v350 = vpop.xlane.xlu0 %349
    %351 = vadd.xlane.f32.xlu0 %v328
    %v352 = vpop.xlane.xlu0 %351
    %353 = vadd.xlane.f32.xlu0 %v329
    %v354 = vpop.xlane.xlu0 %353
    %355 = vadd.xlane.f32.xlu0 %v330
    %v356 = vpop.xlane.xlu0 %355
    %357 = vadd.xlane.f32.xlu0 %v331
    %v358 = vpop.xlane.xlu0 %357
    %359 = vadd.xlane.f32.xlu0 %v332
    %v360 = vpop.xlane.xlu0 %359
    %361 = vadd.xlane.f32.xlu0 %v333
    %v362 = vpop.xlane.xlu0 %361
    %363 = vadd.xlane.f32.xlu0 %v334
    %v364 = vpop.xlane.xlu0 %363
    %365 = vadd.xlane.f32.xlu0 %v335
    %v366 = vpop.xlane.xlu0 %365
    %367 = vadd.xlane.f32.xlu0 %v336
    %v368 = vpop.xlane.xlu0 %367
    %369 = vadd.xlane.f32.xlu0 %v337
    %v370 = vpop.xlane.xlu0 %369
    %371 = vadd.xlane.f32.xlu0 %v338
    %v372 = vpop.xlane.xlu0 %371
    %373 = vadd.xlane.f32.xlu0 %v339
    %v374 = vpop.xlane.xlu0 %373
    %375 = vadd.xlane.f32.xlu0 %v340
    %v376 = vpop.xlane.xlu0 %375
    %377 = vadd.xlane.f32.xlu0 %v341
    %v378 = vpop.xlane.xlu0 %377
    %vm379 = vcmask 1045504
    %v380 = vsel %vm379, %v342, 0.0
    %381 = vadd.xlane.f32.xlu0 %v380
    %v382 = vpop.xlane.xlu0 %381
    %v383 = vmul.f32 %v344, 0.125
    %v384 = vmul.f32 %v346, 0.125
    %v385 = vmul.f32 %v348, 0.125
    %v386 = vmul.f32 %v350, 0.125
    %v387 = vmul.f32 %v352, 0.125
    %v388 = vmul.f32 %v354, 0.125
    %v389 = vmul.f32 %v356, 0.125
    %v390 = vmul.f32 %v358, 0.125
    %v391 = vmul.f32 %v360, 0.125
    %v392 = vmul.f32 %v362, 0.125
    %v393 = vmul.f32 %v364, 0.125
    %v394 = vmul.f32 %v366, 0.125
    %v395 = vmul.f32 %v368, 0.125
    %v396 = vmul.f32 %v370, 0.125
    %v397 = vmul.f32 %v372, 0.125
    %v398 = vmul.f32 %v374, 0.125
    %v399 = vmul.f32 %v376, 0.125
    %v400 = vmul.f32 %v378, 0.125
    %v401 = vmul.f32 %v382, 0.125
    %v402 = vsub.f32 %v231, %v383
    %v403 = vsub.f32 %v236, %v384
    %v404 = vsub.f32 %v241, %v385
    %v405 = vsub.f32 %v246, %v386
    %v406 = vsub.f32 %v251, %v387
    %v407 = vsub.f32 %v256, %v388
    %v408 = vsub.f32 %v261, %v389
    %v409 = vsub.f32 %v266, %v390
    %v410 = vsub.f32 %v271, %v391
    %v411 = vsub.f32 %v276, %v392
    %v412 = vsub.f32 %v281, %v393
    %v413 = vsub.f32 %v286, %v394
    %v414 = vsub.f32 %v291, %v395
    %v415 = vsub.f32 %v296, %v396
    %v416 = vsub.f32 %v301, %v397
    %v417 = vsub.f32 %v306, %v398
    %v418 = vsub.f32 %v311, %v399
    %v419 = vsub.f32 %v316, %v400
    %v420 = vsub.f32 %v321, %v401
    %v421 = vmul.f32 %v402, %v41
    %v422 = vmul.f32 %v403, %v41
    %v423 = vmul.f32 %v404, %v41
    %v424 = vmul.f32 %v405, %v41
    %v425 = vmul.f32 %v406, %v41
    %v426 = vmul.f32 %v407, %v41
    %v427 = vmul.f32 %v408, %v41
    %v428 = vmul.f32 %v409, %v41
    %v429 = vmul.f32 %v410, %v41
    %v430 = vmul.f32 %v411, %v41
    %v431 = vmul.f32 %v412, %v41
    %v432 = vmul.f32 %v413, %v41
    %v433 = vmul.f32 %v414, %v41
    %v434 = vmul.f32 %v415, %v41
    %v435 = vmul.f32 %v416, %v41
    %v436 = vmul.f32 %v417, %v41
    %v437 = vmul.f32 %v418, %v41
    %v438 = vmul.f32 %v419, %v41
    %v439 = vmul.f32 %v420, %v41
    %v440 = vmul.f32 %v421, %v421
    %v441 = vmul.f32 %v422, %v422
    %v442 = vmul.f32 %v423, %v423
    %v443 = vmul.f32 %v424, %v424
    %v444 = vmul.f32 %v425, %v425
    %v445 = vmul.f32 %v426, %v426
    %v446 = vmul.f32 %v427, %v427
    %v447 = vmul.f32 %v428, %v428
    %v448 = vmul.f32 %v429, %v429
    %v449 = vmul.f32 %v430, %v430
    %v450 = vmul.f32 %v431, %v431
    %v451 = vmul.f32 %v432, %v432
    %v452 = vmul.f32 %v433, %v433
    %v453 = vmul.f32 %v434, %v434
    %v454 = vmul.f32 %v435, %v435
    %v455 = vmul.f32 %v436, %v436
    %v456 = vmul.f32 %v437, %v437
    %v457 = vmul.f32 %v438, %v438
    %v458 = vmul.f32 %v439, %v439
    %459 = vadd.xlane.f32.xlu0 %v440
    %v460 = vpop.xlane.xlu0 %459
    %461 = vadd.xlane.f32.xlu0 %v441
    %v462 = vpop.xlane.xlu0 %461
    %463 = vadd.xlane.f32.xlu0 %v442
    %v464 = vpop.xlane.xlu0 %463
    %465 = vadd.xlane.f32.xlu0 %v443
    %v466 = vpop.xlane.xlu0 %465
    %467 = vadd.xlane.f32.xlu0 %v444
    %v468 = vpop.xlane.xlu0 %467
    %469 = vadd.xlane.f32.xlu0 %v445
    %v470 = vpop.xlane.xlu0 %469
    %471 = vadd.xlane.f32.xlu0 %v446
    %v472 = vpop.xlane.xlu0 %471
    %473 = vadd.xlane.f32.xlu0 %v447
    %v474 = vpop.xlane.xlu0 %473
    %475 = vadd.xlane.f32.xlu0 %v448
    %v476 = vpop.xlane.xlu0 %475
    %477 = vadd.xlane.f32.xlu0 %v449
    %v478 = vpop.xlane.xlu0 %477
    %479 = vadd.xlane.f32.xlu0 %v450
    %v480 = vpop.xlane.xlu0 %479
    %481 = vadd.xlane.f32.xlu0 %v451
    %v482 = vpop.xlane.xlu0 %481
    %483 = vadd.xlane.f32.xlu0 %v452
    %v484 = vpop.xlane.xlu0 %483
    %485 = vadd.xlane.f32.xlu0 %v453
    %v486 = vpop.xlane.xlu0 %485
    %487 = vadd.xlane.f32.xlu0 %v454
    %v488 = vpop.xlane.xlu0 %487
    %489 = vadd.xlane.f32.xlu0 %v455
    %v490 = vpop.xlane.xlu0 %489
    %491 = vadd.xlane.f32.xlu0 %v456
    %v492 = vpop.xlane.xlu0 %491
    %493 = vadd.xlane.f32.xlu0 %v457
    %v494 = vpop.xlane.xlu0 %493
    %v495 = vsel %vm379, %v458, 0.0
    %496 = vadd.xlane.f32.xlu0 %v495
    %v497 = vpop.xlane.xlu0 %496
    %v498 = vmul.f32 %v460, 0.125
    %v499 = vmul.f32 %v462, 0.125
    %v500 = vmul.f32 %v464, 0.125
    %v501 = vmul.f32 %v466, 0.125
    %v502 = vmul.f32 %v468, 0.125
    %v503 = vmul.f32 %v470, 0.125
    %v504 = vmul.f32 %v472, 0.125
    %v505 = vmul.f32 %v474, 0.125
    %v506 = vmul.f32 %v476, 0.125
    %v507 = vmul.f32 %v478, 0.125
    %v508 = vmul.f32 %v480, 0.125
    %v509 = vmul.f32 %v482, 0.125
    %v510 = vmul.f32 %v484, 0.125
    %v511 = vmul.f32 %v486, 0.125
    %v512 = vmul.f32 %v488, 0.125
    %v513 = vmul.f32 %v490, 0.125
    %v514 = vmul.f32 %v492, 0.125
    %v515 = vmul.f32 %v494, 0.125
    %v516 = vmul.f32 %v497, 0.125
    %v517 = vadd.f32 %v498, 1e-05
    %v518 = vadd.f32 %v499, 1e-05
    %v519 = vadd.f32 %v500, 1e-05
    %v520 = vadd.f32 %v501, 1e-05
    %v521 = vadd.f32 %v502, 1e-05
    %v522 = vadd.f32 %v503, 1e-05
    %v523 = vadd.f32 %v504, 1e-05
    %v524 = vadd.f32 %v505, 1e-05
    %v525 = vadd.f32 %v506, 1e-05
    %v526 = vadd.f32 %v507, 1e-05
    %v527 = vadd.f32 %v508, 1e-05
    %v528 = vadd.f32 %v509, 1e-05
    %v529 = vadd.f32 %v510, 1e-05
    %v530 = vadd.f32 %v511, 1e-05
    %v531 = vadd.f32 %v512, 1e-05
    %v532 = vadd.f32 %v513, 1e-05
    %v533 = vadd.f32 %v514, 1e-05
    %v534 = vadd.f32 %v515, 1e-05
    %v535 = vadd.f32 %v516, 1e-05
    %v536 = vrsqrt.pop %v517
    %v537 = vrsqrt.pop %v518
    %v538 = vrsqrt.pop %v519
    %v539 = vrsqrt.pop %v520
    %v540 = vrsqrt.pop %v521
    %v541 = vrsqrt.pop %v522
    %v542 = vrsqrt.pop %v523
    %v543 = vrsqrt.pop %v524
    %v544 = vrsqrt.pop %v525
    %v545 = vrsqrt.pop %v526
    %v546 = vrsqrt.pop %v527
    %v547 = vrsqrt.pop %v528
    %v548 = vrsqrt.pop %v529
    %v549 = vrsqrt.pop %v530
    %v550 = vrsqrt.pop %v531
    %v551 = vrsqrt.pop %v532
    %v552 = vrsqrt.pop %v533
    %v553 = vrsqrt.pop %v534
    %v554 = vrsqrt.pop %v535
    %v555 = vmul.f32 %v18, %v536
    %v556 = vmul.f32 %v19, %v537
    %v557 = vmul.f32 %v20, %v538
    %v558 = vmul.f32 %v21, %v539
    %v559 = vmul.f32 %v22, %v540
    %v560 = vmul.f32 %v23, %v541
    %v561 = vmul.f32 %v24, %v542
    %v562 = vmul.f32 %v25, %v543
    %v563 = vmul.f32 %v26, %v544
    %v564 = vmul.f32 %v27, %v545
    %v565 = vmul.f32 %v28, %v546
    %v566 = vmul.f32 %v29, %v547
    %v567 = vmul.f32 %v30, %v548
    %v568 = vmul.f32 %v31, %v549
    %v569 = vmul.f32 %v32, %v550
    %v570 = vmul.f32 %v33, %v551
    %v571 = vmul.f32 %v34, %v552
    %v572 = vmul.f32 %v35, %v553
    %v573 = vmul.f32 %v36, %v554
    %575 = vset.pattern.permute.xlu0 15
    %576 = vperm.xlu0 %575, %v555
    %v577 = vpop.permute.xlu0 %576
    %580 = vset.pattern.permute.xlu0 15
    %581 = vperm.xlu0 %580, %v556
    %v582 = vpop.permute.xlu0 %581
    %585 = vset.pattern.permute.xlu0 15
    %586 = vperm.xlu0 %585, %v557
    %v587 = vpop.permute.xlu0 %586
    %590 = vset.pattern.permute.xlu0 15
    %591 = vperm.xlu0 %590, %v558
    %v592 = vpop.permute.xlu0 %591
    %595 = vset.pattern.permute.xlu0 15
    %596 = vperm.xlu0 %595, %v559
    %v597 = vpop.permute.xlu0 %596
    %600 = vset.pattern.permute.xlu0 15
    %601 = vperm.xlu0 %600, %v560
    %v602 = vpop.permute.xlu0 %601
    %605 = vset.pattern.permute.xlu0 15
    %606 = vperm.xlu0 %605, %v561
    %v607 = vpop.permute.xlu0 %606
    %610 = vset.pattern.permute.xlu0 15
    %611 = vperm.xlu0 %610, %v562
    %v612 = vpop.permute.xlu0 %611
    %615 = vset.pattern.permute.xlu0 15
    %616 = vperm.xlu0 %615, %v563
    %v617 = vpop.permute.xlu0 %616
    %620 = vset.pattern.permute.xlu0 15
    %621 = vperm.xlu0 %620, %v564
    %v622 = vpop.permute.xlu0 %621
    %625 = vset.pattern.permute.xlu0 15
    %626 = vperm.xlu0 %625, %v565
    %v627 = vpop.permute.xlu0 %626
    %630 = vset.pattern.permute.xlu0 15
    %631 = vperm.xlu0 %630, %v566
    %v632 = vpop.permute.xlu0 %631
    %635 = vset.pattern.permute.xlu0 15
    %636 = vperm.xlu0 %635, %v567
    %v637 = vpop.permute.xlu0 %636
    %640 = vset.pattern.permute.xlu0 15
    %641 = vperm.xlu0 %640, %v568
    %v642 = vpop.permute.xlu0 %641
    %645 = vset.pattern.permute.xlu0 15
    %646 = vperm.xlu0 %645, %v569
    %v647 = vpop.permute.xlu0 %646
    %650 = vset.pattern.permute.xlu0 15
    %651 = vperm.xlu0 %650, %v570
    %v652 = vpop.permute.xlu0 %651
    %655 = vset.pattern.permute.xlu0 15
    %656 = vperm.xlu0 %655, %v571
    %v657 = vpop.permute.xlu0 %656
    %660 = vset.pattern.permute.xlu0 15
    %661 = vperm.xlu0 %660, %v572
    %v662 = vpop.permute.xlu0 %661
    %665 = vset.pattern.permute.xlu0 15
    %666 = vperm.xlu0 %665, %v573
    %v667 = vpop.permute.xlu0 %666
    %v669 = vmul.f32 %v402, %v577
    %v670 = vmul.f32 %v403, %v582
    %v671 = vmul.f32 %v404, %v587
    %v672 = vmul.f32 %v405, %v592
    %v673 = vmul.f32 %v406, %v597
    %v674 = vmul.f32 %v407, %v602
    %v675 = vmul.f32 %v408, %v607
    %v676 = vmul.f32 %v409, %v612
    %v677 = vmul.f32 %v410, %v617
    %v678 = vmul.f32 %v411, %v622
    %v679 = vmul.f32 %v412, %v627
    %v680 = vmul.f32 %v413, %v632
    %v681 = vmul.f32 %v414, %v637
    %v682 = vmul.f32 %v415, %v642
    %v683 = vmul.f32 %v416, %v647
    %v684 = vmul.f32 %v417, %v652
    %v685 = vmul.f32 %v418, %v657
    %v686 = vmul.f32 %v419, %v662
    %v687 = vmul.f32 %v420, %v667
    %688 = vset.pattern.permute.xlu0 16
    %689 = vperm.xlu0 %688, %v18
    %v690 = vpop.permute.xlu0 %689
    %692 = vset.pattern.permute.xlu0 16
    %693 = vperm.xlu0 %692, %v19
    %v694 = vpop.permute.xlu0 %693
    %696 = vset.pattern.permute.xlu0 16
    %697 = vperm.xlu0 %696, %v20
    %v698 = vpop.permute.xlu0 %697
    %700 = vset.pattern.permute.xlu0 16
    %701 = vperm.xlu0 %700, %v21
    %v702 = vpop.permute.xlu0 %701
    %704 = vset.pattern.permute.xlu0 16
    %705 = vperm.xlu0 %704, %v22
    %v706 = vpop.permute.xlu0 %705
    %708 = vset.pattern.permute.xlu0 16
    %709 = vperm.xlu0 %708, %v23
    %v710 = vpop.permute.xlu0 %709
    %712 = vset.pattern.permute.xlu0 16
    %713 = vperm.xlu0 %712, %v24
    %v714 = vpop.permute.xlu0 %713
    %716 = vset.pattern.permute.xlu0 16
    %717 = vperm.xlu0 %716, %v25
    %v718 = vpop.permute.xlu0 %717
    %720 = vset.pattern.permute.xlu0 16
    %721 = vperm.xlu0 %720, %v26
    %v722 = vpop.permute.xlu0 %721
    %724 = vset.pattern.permute.xlu0 16
    %725 = vperm.xlu0 %724, %v27
    %v726 = vpop.permute.xlu0 %725
    %728 = vset.pattern.permute.xlu0 16
    %729 = vperm.xlu0 %728, %v28
    %v730 = vpop.permute.xlu0 %729
    %732 = vset.pattern.permute.xlu0 16
    %733 = vperm.xlu0 %732, %v29
    %v734 = vpop.permute.xlu0 %733
    %736 = vset.pattern.permute.xlu0 16
    %737 = vperm.xlu0 %736, %v30
    %v738 = vpop.permute.xlu0 %737
    %740 = vset.pattern.permute.xlu0 16
    %741 = vperm.xlu0 %740, %v31
    %v742 = vpop.permute.xlu0 %741
    %744 = vset.pattern.permute.xlu0 16
    %745 = vperm.xlu0 %744, %v32
    %v746 = vpop.permute.xlu0 %745
    %748 = vset.pattern.permute.xlu0 16
    %749 = vperm.xlu0 %748, %v33
    %v750 = vpop.permute.xlu0 %749
    %752 = vset.pattern.permute.xlu0 16
    %753 = vperm.xlu0 %752, %v34
    %v754 = vpop.permute.xlu0 %753
    %756 = vset.pattern.permute.xlu0 16
    %757 = vperm.xlu0 %756, %v35
    %v758 = vpop.permute.xlu0 %757
    %760 = vset.pattern.permute.xlu0 16
    %761 = vperm.xlu0 %760, %v36
    %v762 = vpop.permute.xlu0 %761
    %v764 = vadd.f32 %v669, %v690
    %v765 = vadd.f32 %v670, %v694
    %v766 = vadd.f32 %v671, %v698
    %v767 = vadd.f32 %v672, %v702
    %v768 = vadd.f32 %v673, %v706
    %v769 = vadd.f32 %v674, %v710
    %v770 = vadd.f32 %v675, %v714
    %v771 = vadd.f32 %v676, %v718
    %v772 = vadd.f32 %v677, %v722
    %v773 = vadd.f32 %v678, %v726
    %v774 = vadd.f32 %v679, %v730
    %v775 = vadd.f32 %v680, %v734
    %v776 = vadd.f32 %v681, %v738
    %v777 = vadd.f32 %v682, %v742
    %v778 = vadd.f32 %v683, %v746
    %v779 = vadd.f32 %v684, %v750
    %v780 = vadd.f32 %v685, %v754
    %v781 = vadd.f32 %v686, %v758
    %v782 = vadd.f32 %v687, %v762
    %vm783 = vcmp.gt.f32.partialorder %v764, 0.0
    %vm784 = vcmp.gt.f32.partialorder %v765, 0.0
    %vm785 = vcmp.gt.f32.partialorder %v766, 0.0
    %vm786 = vcmp.gt.f32.partialorder %v767, 0.0
    %vm787 = vcmp.gt.f32.partialorder %v768, 0.0
    %vm788 = vcmp.gt.f32.partialorder %v769, 0.0
    %vm789 = vcmp.gt.f32.partialorder %v770, 0.0
    %vm790 = vcmp.gt.f32.partialorder %v771, 0.0
    %vm791 = vcmp.gt.f32.partialorder %v772, 0.0
    %vm792 = vcmp.gt.f32.partialorder %v773, 0.0
    %vm793 = vcmp.gt.f32.partialorder %v774, 0.0
    %vm794 = vcmp.gt.f32.partialorder %v775, 0.0
    %vm795 = vcmp.gt.f32.partialorder %v776, 0.0
    %vm796 = vcmp.gt.f32.partialorder %v777, 0.0
    %vm797 = vcmp.gt.f32.partialorder %v778, 0.0
    %vm798 = vcmp.gt.f32.partialorder %v779, 0.0
    %vm799 = vcmp.gt.f32.partialorder %v780, 0.0
    %vm800 = vcmp.gt.f32.partialorder %v781, 0.0
    %vm801 = vcmp.gt.f32.partialorder %v782, 0.0
    %v802 = vmul.f32 %v764, 1.442695
    %v803 = vpow.pop %v802
    %v804 = vmul.f32 %v765, 1.442695
    %v805 = vpow.pop %v804
    %v806 = vmul.f32 %v766, 1.442695
    %v807 = vpow.pop %v806
    %v808 = vmul.f32 %v767, 1.442695
    %v809 = vpow.pop %v808
    %v810 = vmul.f32 %v768, 1.442695
    %v811 = vpow.pop %v810
    %v812 = vmul.f32 %v769, 1.442695
    %v813 = vpow.pop %v812
    %v814 = vmul.f32 %v770, 1.442695
    %v815 = vpow.pop %v814
    %v816 = vmul.f32 %v771, 1.442695
    %v817 = vpow.pop %v816
    %v818 = vmul.f32 %v772, 1.442695
    %v819 = vpow.pop %v818
    %v820 = vmul.f32 %v773, 1.442695
    %v821 = vpow.pop %v820
    %v822 = vmul.f32 %v774, 1.442695
    %v823 = vpow.pop %v822
    %v824 = vmul.f32 %v775, 1.442695
    %v825 = vpow.pop %v824
    %v826 = vmul.f32 %v776, 1.442695
    %v827 = vpow.pop %v826
    %v828 = vmul.f32 %v777, 1.442695
    %v829 = vpow.pop %v828
    %v830 = vmul.f32 %v778, 1.442695
    %v831 = vpow.pop %v830
    %v832 = vmul.f32 %v779, 1.442695
    %v833 = vpow.pop %v832
    %v834 = vmul.f32 %v780, 1.442695
    %v835 = vpow.pop %v834
    %v836 = vmul.f32 %v781, 1.442695
    %v837 = vpow.pop %v836
    %v838 = vmul.f32 %v782, 1.442695
    %v839 = vpow.pop %v838
    %v840 = vsub.f32 %v803, 1.0
    %v841 = vsub.f32 %v805, 1.0
    %v842 = vsub.f32 %v807, 1.0
    %v843 = vsub.f32 %v809, 1.0
    %v844 = vsub.f32 %v811, 1.0
    %v845 = vsub.f32 %v813, 1.0
    %v846 = vsub.f32 %v815, 1.0
    %v847 = vsub.f32 %v817, 1.0
    %v848 = vsub.f32 %v819, 1.0
    %v849 = vsub.f32 %v821, 1.0
    %v850 = vsub.f32 %v823, 1.0
    %v851 = vsub.f32 %v825, 1.0
    %v852 = vsub.f32 %v827, 1.0
    %v853 = vsub.f32 %v829, 1.0
    %v854 = vsub.f32 %v831, 1.0
    %v855 = vsub.f32 %v833, 1.0
    %v856 = vsub.f32 %v835, 1.0
    %v857 = vsub.f32 %v837, 1.0
    %v858 = vsub.f32 %v839, 1.0
    %v859 = vsel %vm783, %v764, %v840
    %v860 = vsel %vm784, %v765, %v841
    %v861 = vsel %vm785, %v766, %v842
    %v862 = vsel %vm786, %v767, %v843
    %v863 = vsel %vm787, %v768, %v844
    %v864 = vsel %vm788, %v769, %v845
    %v865 = vsel %vm789, %v770, %v846
    %v866 = vsel %vm790, %v771, %v847
    %v867 = vsel %vm791, %v772, %v848
    %v868 = vsel %vm792, %v773, %v849
    %v869 = vsel %vm793, %v774, %v850
    %v870 = vsel %vm794, %v775, %v851
    %v871 = vsel %vm795, %v776, %v852
    %v872 = vsel %vm796, %v777, %v853
    %v873 = vsel %vm797, %v778, %v854
    %v874 = vsel %vm798, %v779, %v855
    %v875 = vsel %vm799, %v780, %v856
    %v876 = vsel %vm800, %v781, %v857
    %v877 = vsel %vm801, %v782, %v858
    %v878 = vld [vmem:[%s2] sm:$0xff]
    %v879 = vld [vmem:[%s2 + $0x8] sm:$0xff]
    %v880 = vld [vmem:[%s2 + $0x10] sm:$0xff]
    %v881 = vld [vmem:[%s2 + $0x18] sm:$0xff]
    %v882 = vld [vmem:[%s2 + $0x20] sm:$0xff]
    %v883 = vld [vmem:[%s2 + $0x28] sm:$0xff]
    %v884 = vld [vmem:[%s2 + $0x30] sm:$0xff]
    %v885 = vld [vmem:[%s2 + $0x38] sm:$0xff]
    %v886 = vld [vmem:[%s2 + $0x40] sm:$0xff]
    %v887 = vld [vmem:[%s2 + $0x48] sm:$0xff]
    %v888 = vld [vmem:[%s2 + $0x50] sm:$0xff]
    %v889 = vld [vmem:[%s2 + $0x58] sm:$0xff]
    %v890 = vld [vmem:[%s2 + $0x60] sm:$0xff]
    %v891 = vld [vmem:[%s2 + $0x68] sm:$0xff]
    %v892 = vld [vmem:[%s2 + $0x70] sm:$0xff]
    %v893 = vld [vmem:[%s2 + $0x78] sm:$0xff]
    %v894 = vld [vmem:[%s2 + $0x80] sm:$0xff]
    %v895 = vld [vmem:[%s2 + $0x88] sm:$0xff]
    %v896 = vld [vmem:[%s2 + $0x90] sm:$0xff]
    %v897 = vld [vmem:[%s2 + $0x98] sm:$0xff]
    %v898 = vld [vmem:[%s2 + $0xa0] sm:$0xff]
    %v899 = vld [vmem:[%s2 + $0xa8] sm:$0xff]
    %v900 = vld [vmem:[%s2 + $0xb0] sm:$0xff]
    %v901 = vld [vmem:[%s2 + $0xb8] sm:$0xff]
    %v902 = vld [vmem:[%s2 + $0xc0] sm:$0xf]
    %v903 = vld [vmem:[%s2 + $0xc8] sm:$0xf]
    %vm904 = vcmask 179200
    %v906 = vsel %vm904, %v879, 0
    %v909 = vsel %vm904, %v881, 0
    %v912 = vsel %vm904, %v883, 0
    %v915 = vsel %vm904, %v885, 0
    %v918 = vsel %vm904, %v887, 0
    %v921 = vsel %vm904, %v889, 0
    %v924 = vsel %vm904, %v891, 0
    %v927 = vsel %vm904, %v893, 0
    %v930 = vsel %vm904, %v895, 0
    %v933 = vsel %vm904, %v897, 0
    %v936 = vsel %vm904, %v899, 0
    %v939 = vsel %vm904, %v901, 0
    %v942 = vsel %vm904, %v903, 0
    %v945 = vsel %vm379, %v877, 0
    %947 = vmatprep.subr.mxu0 0.0
    %948 = vmatpush1.msra.mxu0 %v859
    %949 = vmatprep.subr.mxu0 0.0
    %950 = vmatpush1.msra.mxu0 %v860
    %951 = vmatprep.subr.mxu0 0.0
    %952 = vmatpush1.msra.mxu0 %v861
    %953 = vmatprep.subr.mxu0 0.0
    %954 = vmatpush1.msra.mxu0 %v862
    %955 = vmatprep.subr.mxu0 0.0
    %956 = vmatpush1.msra.mxu0 %v863
    %957 = vmatprep.subr.mxu0 0.0
    %958 = vmatpush1.msra.mxu0 %v864
    %959 = vmatprep.subr.mxu0 0.0
    %960 = vmatpush1.msra.mxu0 %v865
    %961 = vmatprep.subr.mxu0 0.0
    %962 = vmatpush1.msra.mxu0 %v866
    %963 = vmatprep.subr.mxu0 0.0
    %964 = vmatpush1.msra.mxu0 %v867
    %965 = vmatprep.subr.mxu0 0.0
    %966 = vmatpush1.msra.mxu0 %v868
    %967 = vmatprep.subr.mxu0 0.0
    %968 = vmatpush1.msra.mxu0 %v869
    %969 = vmatprep.subr.mxu0 0.0
    %970 = vmatpush1.msra.mxu0 %v870
    %971 = vmatprep.subr.mxu0 0.0
    %972 = vmatpush1.msra.mxu0 %v871
    %973 = vmatprep.subr.mxu0 0.0
    %974 = vmatpush1.msra.mxu0 %v872
    %975 = vmatprep.subr.mxu0 0.0
    %976 = vmatpush1.msra.mxu0 %v873
    %977 = vmatprep.subr.mxu0 0.0
    %978 = vmatpush1.msra.mxu0 %v874
    %979 = vmatprep.subr.mxu0 0.0
    %980 = vmatpush1.msra.mxu0 %v875
    %981 = vmatprep.subr.mxu0 0.0
    %982 = vmatpush1.msra.mxu0 %v876
    %983 = vmatprep.subr.mxu0 0.0
    %984 = vmatpush1.msra.mxu0 %v945
    %985 = vmatprep.subr.mxu0 0.0
    %986 = vmatpush1.msra.mxu0 0.0
    %987 = vmatprep.subr.mxu0 0.0
    %988 = vmatpush1.msra.mxu0 0.0
    %989 = vmatprep.subr.mxu0 0.0
    %990 = vmatpush1.msra.mxu0 0.0
    %991 = vmatprep.subr.mxu0 0.0
    %992 = vmatpush1.msra.mxu0 0.0
    %993 = vmatprep.subr.mxu0 0.0
    %994 = vmatpush1.msra.mxu0 0.0
    %995 = vmatprep.subr.mxu0 0.0
    %996 = vmatpush1.msra.mxu0 0.0
    %997 = vmatprep.subr.mxu0 0.0
    %998 = vmatpush1.msra.mxu0 0.0
    %999 = vmatprep.subr.mxu0 0.0
    %1000 = vmatpush1.msra.mxu0 0.0
    %1001 = vmatprep.subr.mxu0 0.0
    %1002 = vmatpush1.msra.mxu0 0.0
    %1003 = vmatprep.subr.mxu0 0.0
    %1004 = vmatpush1.msra.mxu0 0.0
    %1005 = vmatprep.subr.mxu0 0.0
    %1006 = vmatpush1.msra.mxu0 0.0
    %1007 = vmatprep.subr.mxu0 0.0
    %1008 = vmatpush1.msra.mxu0 0.0
    %1009 = vmatprep.subr.mxu0 0.0
    %1010 = vmatpush1.msra.mxu0 0.0
    %1011 = vmatprep.mubr.f32.mxu0 %v906
    %1012 = vmatmul.mubr.f32.gmra.mrb[0].mxu0 %v878
    %v1013 = vpop.f32.mrb[0].mxu0
    %v1014 = vadd.f32 0.0, %v1013
    %v1015 = vpop.f32.mrb[0].mxu0
    %1016 = vmatprep.mubr.f32.mxu0 %v909
    %1017 = vmatmul.mubr.f32.gmra.mrb[0].mxu0 %v880
    %v1018 = vpop.f32.mrb[0].mxu0
    %v1019 = vadd.f32 0.0, %v1018
    %v1020 = vpop.f32.mrb[0].mxu0
    %1021 = vmatprep.mubr.f32.mxu0 %v912
    %1022 = vmatmul.mubr.f32.gmra.mrb[0].mxu0 %v882
    %v1023 = vpop.f32.mrb[0].mxu0
    %v1024 = vadd.f32 0.0, %v1023
    %v1025 = vpop.f32.mrb[0].mxu0
    %1026 = vmatprep.mubr.f32.mxu0 %v915
    %1027 = vmatmul.mubr.f32.gmra.mrb[0].mxu0 %v884
    %v1028 = vpop.f32.mrb[0].mxu0
    %v1029 = vadd.f32 0.0, %v1028
    %v1030 = vpop.f32.mrb[0].mxu0
    %1031 = vmatprep.mubr.f32.mxu0 %v918
    %1032 = vmatmul.mubr.f32.gmra.mrb[0].mxu0 %v886
    %v1033 = vpop.f32.mrb[0].mxu0
    %v1034 = vadd.f32 0.0, %v1033
    %v1035 = vpop.f32.mrb[0].mxu0
    %1036 = vmatprep.mubr.f32.mxu0 %v921
    %1037 = vmatmul.mubr.f32.gmra.mrb[0].mxu0 %v888
    %v1038 = vpop.f32.mrb[0].mxu0
    %v1039 = vadd.f32 0.0, %v1038
    %v1040 = vpop.f32.mrb[0].mxu0
    %1041 = vmatprep.mubr.f32.mxu0 %v924
    %1042 = vmatmul.mubr.f32.gmra.mrb[0].mxu0 %v890
    %v1043 = vpop.f32.mrb[0].mxu0
    %v1044 = vadd.f32 0.0, %v1043
    %v1045 = vpop.f32.mrb[0].mxu0
    %1046 = vmatprep.mubr.f32.mxu0 %v927
    %1047 = vmatmul.mubr.f32.gmra.mrb[0].mxu0 %v892
    %v1048 = vpop.f32.mrb[0].mxu0
    %v1049 = vadd.f32 0.0, %v1048
    %v1050 = vpop.f32.mrb[0].mxu0
    %1051 = vmatprep.mubr.f32.mxu0 %v930
    %1052 = vmatmul.mubr.f32.gmra.mrb[0].mxu0 %v894
    %v1053 = vpop.f32.mrb[0].mxu0
    %v1054 = vadd.f32 0.0, %v1053
    %v1055 = vpop.f32.mrb[0].mxu0
    %1056 = vmatprep.mubr.f32.mxu0 %v933
    %1057 = vmatmul.mubr.f32.gmra.mrb[0].mxu0 %v896
    %v1058 = vpop.f32.mrb[0].mxu0
    %v1059 = vadd.f32 0.0, %v1058
    %v1060 = vpop.f32.mrb[0].mxu0
    %1061 = vmatprep.mubr.f32.mxu0 %v936
    %1062 = vmatmul.mubr.f32.gmra.mrb[0].mxu0 %v898
    %v1063 = vpop.f32.mrb[0].mxu0
    %v1064 = vadd.f32 0.0, %v1063
    %v1065 = vpop.f32.mrb[0].mxu0
    %1066 = vmatprep.mubr.f32.mxu0 %v939
    %1067 = vmatmul.mubr.f32.gmra.mrb[0].mxu0 %v900
    %v1068 = vpop.f32.mrb[0].mxu0
    %v1069 = vadd.f32 0.0, %v1068
    %v1070 = vpop.f32.mrb[0].mxu0
    %1071 = vmatprep.mubr.f32.mxu0 %v942
    %1072 = vmatmul.mubr.f32.gmra.mrb[0].mxu0 %v902
    %v1073 = vpop.f32.mrb[0].mxu0
    %v1074 = vadd.f32 0.0, %v1073
    %v1075 = vpop.f32.mrb[0].mxu0
    %1076 = vdwg.mxu0
    %v1077 = vmul.f32 %v1014, %v41
    %v1078 = vmul.f32 %v1019, %v41
    %v1079 = vmul.f32 %v1024, %v41
    %v1080 = vmul.f32 %v1029, %v41
    %v1081 = vmul.f32 %v1034, %v41
    %v1082 = vmul.f32 %v1039, %v41
    %v1083 = vmul.f32 %v1044, %v41
    %v1084 = vmul.f32 %v1049, %v41
    %v1085 = vmul.f32 %v1054, %v41
    %v1086 = vmul.f32 %v1059, %v41
    %v1087 = vmul.f32 %v1064, %v41
    %v1088 = vmul.f32 %v1069, %v41
    %v1089 = vmul.f32 %v1074, %v41
    %1090 = vadd.xlane.f32.xlu0 %v1077
    %v1091 = vpop.xlane.xlu0 %1090
    %1092 = vadd.xlane.f32.xlu0 %v1078
    %v1093 = vpop.xlane.xlu0 %1092
    %1094 = vadd.xlane.f32.xlu0 %v1079
    %v1095 = vpop.xlane.xlu0 %1094
    %1096 = vadd.xlane.f32.xlu0 %v1080
    %v1097 = vpop.xlane.xlu0 %1096
    %1098 = vadd.xlane.f32.xlu0 %v1081
    %v1099 = vpop.xlane.xlu0 %1098
    %1100 = vadd.xlane.f32.xlu0 %v1082
    %v1101 = vpop.xlane.xlu0 %1100
    %1102 = vadd.xlane.f32.xlu0 %v1083
    %v1103 = vpop.xlane.xlu0 %1102
    %1104 = vadd.xlane.f32.xlu0 %v1084
    %v1105 = vpop.xlane.xlu0 %1104
    %1106 = vadd.xlane.f32.xlu0 %v1085
    %v1107 = vpop.xlane.xlu0 %1106
    %1108 = vadd.xlane.f32.xlu0 %v1086
    %v1109 = vpop.xlane.xlu0 %1108
    %1110 = vadd.xlane.f32.xlu0 %v1087
    %v1111 = vpop.xlane.xlu0 %1110
    %1112 = vadd.xlane.f32.xlu0 %v1088
    %v1113 = vpop.xlane.xlu0 %1112
    %vm1114 = vcmask 1043456
    %v1115 = vsel %vm1114, %v1089, 0.0
    %1116 = vadd.xlane.f32.xlu0 %v1115
    %v1117 = vpop.xlane.xlu0 %1116
    %v1118 = vmul.f32 %v1091, 0.125
    %v1119 = vmul.f32 %v1093, 0.125
    %v1120 = vmul.f32 %v1095, 0.125
    %v1121 = vmul.f32 %v1097, 0.125
    %v1122 = vmul.f32 %v1099, 0.125
    %v1123 = vmul.f32 %v1101, 0.125
    %v1124 = vmul.f32 %v1103, 0.125
    %v1125 = vmul.f32 %v1105, 0.125
    %v1126 = vmul.f32 %v1107, 0.125
    %v1127 = vmul.f32 %v1109, 0.125
    %v1128 = vmul.f32 %v1111, 0.125
    %v1129 = vmul.f32 %v1113, 0.125
    %v1130 = vmul.f32 %v1117, 0.125
    %v1131 = vsub.f32 %v1014, %v1118
    %v1132 = vsub.f32 %v1019, %v1119
    %v1133 = vsub.f32 %v1024, %v1120
    %v1134 = vsub.f32 %v1029, %v1121
    %v1135 = vsub.f32 %v1034, %v1122
    %v1136 = vsub.f32 %v1039, %v1123
    %v1137 = vsub.f32 %v1044, %v1124
    %v1138 = vsub.f32 %v1049, %v1125
    %v1139 = vsub.f32 %v1054, %v1126
    %v1140 = vsub.f32 %v1059, %v1127
    %v1141 = vsub.f32 %v1064, %v1128
    %v1142 = vsub.f32 %v1069, %v1129
    %v1143 = vsub.f32 %v1074, %v1130
    %v1144 = vmul.f32 %v1131, %v41
    %v1145 = vmul.f32 %v1132, %v41
    %v1146 = vmul.f32 %v1133, %v41
    %v1147 = vmul.f32 %v1134, %v41
    %v1148 = vmul.f32 %v1135, %v41
    %v1149 = vmul.f32 %v1136, %v41
    %v1150 = vmul.f32 %v1137, %v41
    %v1151 = vmul.f32 %v1138, %v41
    %v1152 = vmul.f32 %v1139, %v41
    %v1153 = vmul.f32 %v1140, %v41
    %v1154 = vmul.f32 %v1141, %v41
    %v1155 = vmul.f32 %v1142, %v41
    %v1156 = vmul.f32 %v1143, %v41
    %v1157 = vmul.f32 %v1144, %v1144
    %v1158 = vmul.f32 %v1145, %v1145
    %v1159 = vmul.f32 %v1146, %v1146
    %v1160 = vmul.f32 %v1147, %v1147
    %v1161 = vmul.f32 %v1148, %v1148
    %v1162 = vmul.f32 %v1149, %v1149
    %v1163 = vmul.f32 %v1150, %v1150
    %v1164 = vmul.f32 %v1151, %v1151
    %v1165 = vmul.f32 %v1152, %v1152
    %v1166 = vmul.f32 %v1153, %v1153
    %v1167 = vmul.f32 %v1154, %v1154
    %v1168 = vmul.f32 %v1155, %v1155
    %v1169 = vmul.f32 %v1156, %v1156
    %1170 = vadd.xlane.f32.xlu0 %v1157
    %v1171 = vpop.xlane.xlu0 %1170
    %1172 = vadd.xlane.f32.xlu0 %v1158
    %v1173 = vpop.xlane.xlu0 %1172
    %1174 = vadd.xlane.f32.xlu0 %v1159
    %v1175 = vpop.xlane.xlu0 %1174
    %1176 = vadd.xlane.f32.xlu0 %v1160
    %v1177 = vpop.xlane.xlu0 %1176
    %1178 = vadd.xlane.f32.xlu0 %v1161
    %v1179 = vpop.xlane.xlu0 %1178
    %1180 = vadd.xlane.f32.xlu0 %v1162
    %v1181 = vpop.xlane.xlu0 %1180
    %1182 = vadd.xlane.f32.xlu0 %v1163
    %v1183 = vpop.xlane.xlu0 %1182
    %1184 = vadd.xlane.f32.xlu0 %v1164
    %v1185 = vpop.xlane.xlu0 %1184
    %1186 = vadd.xlane.f32.xlu0 %v1165
    %v1187 = vpop.xlane.xlu0 %1186
    %1188 = vadd.xlane.f32.xlu0 %v1166
    %v1189 = vpop.xlane.xlu0 %1188
    %1190 = vadd.xlane.f32.xlu0 %v1167
    %v1191 = vpop.xlane.xlu0 %1190
    %1192 = vadd.xlane.f32.xlu0 %v1168
    %v1193 = vpop.xlane.xlu0 %1192
    %v1194 = vsel %vm1114, %v1169, 0.0
    %1195 = vadd.xlane.f32.xlu0 %v1194
    %v1196 = vpop.xlane.xlu0 %1195
    %v1197 = vmul.f32 %v1171, 0.125
    %v1198 = vmul.f32 %v1173, 0.125
    %v1199 = vmul.f32 %v1175, 0.125
    %v1200 = vmul.f32 %v1177, 0.125
    %v1201 = vmul.f32 %v1179, 0.125
    %v1202 = vmul.f32 %v1181, 0.125
    %v1203 = vmul.f32 %v1183, 0.125
    %v1204 = vmul.f32 %v1185, 0.125
    %v1205 = vmul.f32 %v1187, 0.125
    %v1206 = vmul.f32 %v1189, 0.125
    %v1207 = vmul.f32 %v1191, 0.125
    %v1208 = vmul.f32 %v1193, 0.125
    %v1209 = vmul.f32 %v1196, 0.125
    %v1210 = vadd.f32 %v1197, 1e-05
    %v1211 = vadd.f32 %v1198, 1e-05
    %v1212 = vadd.f32 %v1199, 1e-05
    %v1213 = vadd.f32 %v1200, 1e-05
    %v1214 = vadd.f32 %v1201, 1e-05
    %v1215 = vadd.f32 %v1202, 1e-05
    %v1216 = vadd.f32 %v1203, 1e-05
    %v1217 = vadd.f32 %v1204, 1e-05
    %v1218 = vadd.f32 %v1205, 1e-05
    %v1219 = vadd.f32 %v1206, 1e-05
    %v1220 = vadd.f32 %v1207, 1e-05
    %v1221 = vadd.f32 %v1208, 1e-05
    %v1222 = vadd.f32 %v1209, 1e-05
    %v1223 = vrsqrt.pop %v1210
    %v1224 = vrsqrt.pop %v1211
    %v1225 = vrsqrt.pop %v1212
    %v1226 = vrsqrt.pop %v1213
    %v1227 = vrsqrt.pop %v1214
    %v1228 = vrsqrt.pop %v1215
    %v1229 = vrsqrt.pop %v1216
    %v1230 = vrsqrt.pop %v1217
    %v1231 = vrsqrt.pop %v1218
    %v1232 = vrsqrt.pop %v1219
    %v1233 = vrsqrt.pop %v1220
    %v1234 = vrsqrt.pop %v1221
    %v1235 = vrsqrt.pop %v1222
    %v1236 = vmul.f32 %v18, %v1223
    %v1237 = vmul.f32 %v19, %v1224
    %v1238 = vmul.f32 %v20, %v1225
    %v1239 = vmul.f32 %v21, %v1226
    %v1240 = vmul.f32 %v22, %v1227
    %v1241 = vmul.f32 %v23, %v1228
    %v1242 = vmul.f32 %v24, %v1229
    %v1243 = vmul.f32 %v25, %v1230
    %v1244 = vmul.f32 %v26, %v1231
    %v1245 = vmul.f32 %v27, %v1232
    %v1246 = vmul.f32 %v28, %v1233
    %v1247 = vmul.f32 %v29, %v1234
    %v1248 = vmul.f32 %v30, %v1235
    %1250 = vset.pattern.permute.xlu0 17
    %1251 = vperm.xlu0 %1250, %v1236
    %v1252 = vpop.permute.xlu0 %1251
    %1255 = vset.pattern.permute.xlu0 17
    %1256 = vperm.xlu0 %1255, %v1237
    %v1257 = vpop.permute.xlu0 %1256
    %1260 = vset.pattern.permute.xlu0 17
    %1261 = vperm.xlu0 %1260, %v1238
    %v1262 = vpop.permute.xlu0 %1261
    %1265 = vset.pattern.permute.xlu0 17
    %1266 = vperm.xlu0 %1265, %v1239
    %v1267 = vpop.permute.xlu0 %1266
    %1270 = vset.pattern.permute.xlu0 17
    %1271 = vperm.xlu0 %1270, %v1240
    %v1272 = vpop.permute.xlu0 %1271
    %1275 = vset.pattern.permute.xlu0 17
    %1276 = vperm.xlu0 %1275, %v1241
    %v1277 = vpop.permute.xlu0 %1276
    %1280 = vset.pattern.permute.xlu0 17
    %1281 = vperm.xlu0 %1280, %v1242
    %v1282 = vpop.permute.xlu0 %1281
    %1285 = vset.pattern.permute.xlu0 17
    %1286 = vperm.xlu0 %1285, %v1243
    %v1287 = vpop.permute.xlu0 %1286
    %1290 = vset.pattern.permute.xlu0 17
    %1291 = vperm.xlu0 %1290, %v1244
    %v1292 = vpop.permute.xlu0 %1291
    %1295 = vset.pattern.permute.xlu0 17
    %1296 = vperm.xlu0 %1295, %v1245
    %v1297 = vpop.permute.xlu0 %1296
    %1300 = vset.pattern.permute.xlu0 17
    %1301 = vperm.xlu0 %1300, %v1246
    %v1302 = vpop.permute.xlu0 %1301
    %1305 = vset.pattern.permute.xlu0 17
    %1306 = vperm.xlu0 %1305, %v1247
    %v1307 = vpop.permute.xlu0 %1306
    %1310 = vset.pattern.permute.xlu0 17
    %1311 = vperm.xlu0 %1310, %v1248
    %v1312 = vpop.permute.xlu0 %1311
    %v1314 = vmul.f32 %v1131, %v1252
    %v1315 = vmul.f32 %v1132, %v1257
    %v1316 = vmul.f32 %v1133, %v1262
    %v1317 = vmul.f32 %v1134, %v1267
    %v1318 = vmul.f32 %v1135, %v1272
    %v1319 = vmul.f32 %v1136, %v1277
    %v1320 = vmul.f32 %v1137, %v1282
    %v1321 = vmul.f32 %v1138, %v1287
    %v1322 = vmul.f32 %v1139, %v1292
    %v1323 = vmul.f32 %v1140, %v1297
    %v1324 = vmul.f32 %v1141, %v1302
    %v1325 = vmul.f32 %v1142, %v1307
    %v1326 = vmul.f32 %v1143, %v1312
    %1327 = vset.pattern.permute.xlu0 18
    %1328 = vperm.xlu0 %1327, %v18
    %v1329 = vpop.permute.xlu0 %1328
    %1331 = vset.pattern.permute.xlu0 18
    %1332 = vperm.xlu0 %1331, %v19
    %v1333 = vpop.permute.xlu0 %1332
    %1335 = vset.pattern.permute.xlu0 18
    %1336 = vperm.xlu0 %1335, %v20
    %v1337 = vpop.permute.xlu0 %1336
    %1339 = vset.pattern.permute.xlu0 18
    %1340 = vperm.xlu0 %1339, %v21
    %v1341 = vpop.permute.xlu0 %1340
    %1343 = vset.pattern.permute.xlu0 18
    %1344 = vperm.xlu0 %1343, %v22
    %v1345 = vpop.permute.xlu0 %1344
    %1347 = vset.pattern.permute.xlu0 18
    %1348 = vperm.xlu0 %1347, %v23
    %v1349 = vpop.permute.xlu0 %1348
    %1351 = vset.pattern.permute.xlu0 18
    %1352 = vperm.xlu0 %1351, %v24
    %v1353 = vpop.permute.xlu0 %1352
    %1355 = vset.pattern.permute.xlu0 18
    %1356 = vperm.xlu0 %1355, %v25
    %v1357 = vpop.permute.xlu0 %1356
    %1359 = vset.pattern.permute.xlu0 18
    %1360 = vperm.xlu0 %1359, %v26
    %v1361 = vpop.permute.xlu0 %1360
    %1363 = vset.pattern.permute.xlu0 18
    %1364 = vperm.xlu0 %1363, %v27
    %v1365 = vpop.permute.xlu0 %1364
    %1367 = vset.pattern.permute.xlu0 18
    %1368 = vperm.xlu0 %1367, %v28
    %v1369 = vpop.permute.xlu0 %1368
    %1371 = vset.pattern.permute.xlu0 18
    %1372 = vperm.xlu0 %1371, %v29
    %v1373 = vpop.permute.xlu0 %1372
    %1375 = vset.pattern.permute.xlu0 18
    %1376 = vperm.xlu0 %1375, %v30
    %v1377 = vpop.permute.xlu0 %1376
    %v1379 = vadd.f32 %v1314, %v1329
    %v1380 = vadd.f32 %v1315, %v1333
    %v1381 = vadd.f32 %v1316, %v1337
    %v1382 = vadd.f32 %v1317, %v1341
    %v1383 = vadd.f32 %v1318, %v1345
    %v1384 = vadd.f32 %v1319, %v1349
    %v1385 = vadd.f32 %v1320, %v1353
    %v1386 = vadd.f32 %v1321, %v1357
    %v1387 = vadd.f32 %v1322, %v1361
    %v1388 = vadd.f32 %v1323, %v1365
    %v1389 = vadd.f32 %v1324, %v1369
    %v1390 = vadd.f32 %v1325, %v1373
    %v1391 = vadd.f32 %v1326, %v1377
    %vm1392 = vcmp.gt.f32.partialorder %v1379, 0.0
    %vm1393 = vcmp.gt.f32.partialorder %v1380, 0.0
    %vm1394 = vcmp.gt.f32.partialorder %v1381, 0.0
    %vm1395 = vcmp.gt.f32.partialorder %v1382, 0.0
    %vm1396 = vcmp.gt.f32.partialorder %v1383, 0.0
    %vm1397 = vcmp.gt.f32.partialorder %v1384, 0.0
    %vm1398 = vcmp.gt.f32.partialorder %v1385, 0.0
    %vm1399 = vcmp.gt.f32.partialorder %v1386, 0.0
    %vm1400 = vcmp.gt.f32.partialorder %v1387, 0.0
    %vm1401 = vcmp.gt.f32.partialorder %v1388, 0.0
    %vm1402 = vcmp.gt.f32.partialorder %v1389, 0.0
    %vm1403 = vcmp.gt.f32.partialorder %v1390, 0.0
    %vm1404 = vcmp.gt.f32.partialorder %v1391, 0.0
    %v1405 = vmul.f32 %v1379, 1.442695
    %v1406 = vpow.pop %v1405
    %v1407 = vmul.f32 %v1380, 1.442695
    %v1408 = vpow.pop %v1407
    %v1409 = vmul.f32 %v1381, 1.442695
    %v1410 = vpow.pop %v1409
    %v1411 = vmul.f32 %v1382, 1.442695
    %v1412 = vpow.pop %v1411
    %v1413 = vmul.f32 %v1383, 1.442695
    %v1414 = vpow.pop %v1413
    %v1415 = vmul.f32 %v1384, 1.442695
    %v1416 = vpow.pop %v1415
    %v1417 = vmul.f32 %v1385, 1.442695
    %v1418 = vpow.pop %v1417
    %v1419 = vmul.f32 %v1386, 1.442695
    %v1420 = vpow.pop %v1419
    %v1421 = vmul.f32 %v1387, 1.442695
    %v1422 = vpow.pop %v1421
    %v1423 = vmul.f32 %v1388, 1.442695
    %v1424 = vpow.pop %v1423
    %v1425 = vmul.f32 %v1389, 1.442695
    %v1426 = vpow.pop %v1425
    %v1427 = vmul.f32 %v1390, 1.442695
    %v1428 = vpow.pop %v1427
    %v1429 = vmul.f32 %v1391, 1.442695
    %v1430 = vpow.pop %v1429
    %v1431 = vsub.f32 %v1406, 1.0
    %v1432 = vsub.f32 %v1408, 1.0
    %v1433 = vsub.f32 %v1410, 1.0
    %v1434 = vsub.f32 %v1412, 1.0
    %v1435 = vsub.f32 %v1414, 1.0
    %v1436 = vsub.f32 %v1416, 1.0
    %v1437 = vsub.f32 %v1418, 1.0
    %v1438 = vsub.f32 %v1420, 1.0
    %v1439 = vsub.f32 %v1422, 1.0
    %v1440 = vsub.f32 %v1424, 1.0
    %v1441 = vsub.f32 %v1426, 1.0
    %v1442 = vsub.f32 %v1428, 1.0
    %v1443 = vsub.f32 %v1430, 1.0
    %v1444 = vsel %vm1392, %v1379, %v1431
    %v1445 = vsel %vm1393, %v1380, %v1432
    %v1446 = vsel %vm1394, %v1381, %v1433
    %v1447 = vsel %vm1395, %v1382, %v1434
    %v1448 = vsel %vm1396, %v1383, %v1435
    %v1449 = vsel %vm1397, %v1384, %v1436
    %v1450 = vsel %vm1398, %v1385, %v1437
    %v1451 = vsel %vm1399, %v1386, %v1438
    %v1452 = vsel %vm1400, %v1387, %v1439
    %v1453 = vsel %vm1401, %v1388, %v1440
    %v1454 = vsel %vm1402, %v1389, %v1441
    %v1455 = vsel %vm1403, %v1390, %v1442
    %v1456 = vsel %vm1404, %v1391, %v1443
    %v1457 = vld [vmem:[%s3] sm:$0xff]
    %v1458 = vld [vmem:[%s3 + $0x8] sm:$0xff]
    %v1459 = vld [vmem:[%s3 + $0x10] sm:$0xff]
    %v1460 = vld [vmem:[%s3 + $0x18] sm:$0xff]
    %v1461 = vld [vmem:[%s3 + $0x20] sm:$0xff]
    %v1462 = vld [vmem:[%s3 + $0x28] sm:$0xff]
    %v1463 = vld [vmem:[%s3 + $0x30] sm:$0x3]
    %vm1464 = vcmask 818176
    %v1466 = vsel %vm1464, %v1457, 0
    %v1469 = vsel %vm1464, %v1458, 0
    %v1472 = vsel %vm1464, %v1459, 0
    %v1475 = vsel %vm1464, %v1460, 0
    %v1478 = vsel %vm1464, %v1461, 0
    %v1481 = vsel %vm1464, %v1462, 0
    %v1484 = vsel %vm1464, %v1463, 0
    %v1487 = vsel %vm1114, %v1456, 0
    %1489 = vmatprep.subr.mxu0 0.0
    %1490 = vmatpush1.msra.mxu0 %v1444
    %1491 = vmatprep.subr.mxu0 0.0
    %1492 = vmatpush1.msra.mxu0 %v1445
    %1493 = vmatprep.subr.mxu0 0.0
    %1494 = vmatpush1.msra.mxu0 %v1446
    %1495 = vmatprep.subr.mxu0 0.0
    %1496 = vmatpush1.msra.mxu0 %v1447
    %1497 = vmatprep.subr.mxu0 0.0
    %1498 = vmatpush1.msra.mxu0 %v1448
    %1499 = vmatprep.subr.mxu0 0.0
    %1500 = vmatpush1.msra.mxu0 %v1449
    %1501 = vmatprep.subr.mxu0 0.0
    %1502 = vmatpush1.msra.mxu0 %v1450
    %1503 = vmatprep.subr.mxu0 0.0
    %1504 = vmatpush1.msra.mxu0 %v1451
    %1505 = vmatprep.subr.mxu0 0.0
    %1506 = vmatpush1.msra.mxu0 %v1452
    %1507 = vmatprep.subr.mxu0 0.0
    %1508 = vmatpush1.msra.mxu0 %v1453
    %1509 = vmatprep.subr.mxu0 0.0
    %1510 = vmatpush1.msra.mxu0 %v1454
    %1511 = vmatprep.subr.mxu0 0.0
    %1512 = vmatpush1.msra.mxu0 %v1455
    %1513 = vmatprep.subr.mxu0 0.0
    %1514 = vmatpush1.msra.mxu0 %v1487
    %1515 = vmatprep.subr.mxu0 0.0
    %1516 = vmatpush1.msra.mxu0 0.0
    %1517 = vmatprep.subr.mxu0 0.0
    %1518 = vmatpush1.msra.mxu0 0.0
    %1519 = vmatprep.subr.mxu0 0.0
    %1520 = vmatpush1.msra.mxu0 0.0
    %1521 = vmatprep.subr.mxu0 0.0
    %1522 = vmatpush1.msra.mxu0 0.0
    %1523 = vmatprep.subr.mxu0 0.0
    %1524 = vmatpush1.msra.mxu0 0.0
    %1525 = vmatprep.subr.mxu0 0.0
    %1526 = vmatpush1.msra.mxu0 0.0
    %1527 = vmatprep.subr.mxu0 0.0
    %1528 = vmatpush1.msra.mxu0 0.0
    %1529 = vmatprep.subr.mxu0 0.0
    %1530 = vmatpush1.msra.mxu0 0.0
    %1531 = vmatprep.subr.mxu0 0.0
    %1532 = vmatpush1.msra.mxu0 0.0
    %1533 = vmatprep.subr.mxu0 0.0
    %1534 = vmatpush1.msra.mxu0 0.0
    %1535 = vmatprep.subr.mxu0 0.0
    %1536 = vmatpush1.msra.mxu0 0.0
    %1537 = vmatprep.subr.mxu0 0.0
    %1538 = vmatpush1.msra.mxu0 0.0
    %1539 = vmatprep.subr.mxu0 0.0
    %1540 = vmatpush1.msra.mxu0 0.0
    %1541 = vmatprep.subr.mxu0 0.0
    %1542 = vmatpush1.msra.mxu0 0.0
    %1543 = vmatprep.subr.mxu0 0.0
    %1544 = vmatpush1.msra.mxu0 0.0
    %1545 = vmatprep.subr.mxu0 0.0
    %1546 = vmatpush1.msra.mxu0 0.0
    %1547 = vmatprep.subr.mxu0 0.0
    %1548 = vmatpush1.msra.mxu0 0.0
    %1549 = vmatprep.subr.mxu0 0.0
    %1550 = vmatpush1.msra.mxu0 0.0
    %1551 = vmatprep.subr.mxu0 0.0
    %1552 = vmatpush1.msra.mxu0 0.0
    %1553 = vmatprep.mubr.f32.mxu0 0.0
    %1554 = vmatmul.mubr.f32.gmra.mrb[0].mxu0 %v1466
    %v1555 = vpop.f32.mrb[0].mxu0
    %v1556 = vadd.f32 0.0, %v1555
    %v1557 = vpop.f32.mrb[0].mxu0
    %1558 = vmatprep.mubr.f32.mxu0 0.0
    %1559 = vmatmul.mubr.f32.gmra.mrb[0].mxu0 %v1469
    %v1560 = vpop.f32.mrb[0].mxu0
    %v1561 = vadd.f32 0.0, %v1560
    %v1562 = vpop.f32.mrb[0].mxu0
    %1563 = vmatprep.mubr.f32.mxu0 0.0
    %1564 = vmatmul.mubr.f32.gmra.mrb[0].mxu0 %v1472
    %v1565 = vpop.f32.mrb[0].mxu0
    %v1566 = vadd.f32 0.0, %v1565
    %v1567 = vpop.f32.mrb[0].mxu0
    %1568 = vmatprep.mubr.f32.mxu0 0.0
    %1569 = vmatmul.mubr.f32.gmra.mrb[0].mxu0 %v1475
    %v1570 = vpop.f32.mrb[0].mxu0
    %v1571 = vadd.f32 0.0, %v1570
    %v1572 = vpop.f32.mrb[0].mxu0
    %1573 = vmatprep.mubr.f32.mxu0 0.0
    %1574 = vmatmul.mubr.f32.gmra.mrb[0].mxu0 %v1478
    %v1575 = vpop.f32.mrb[0].mxu0
    %v1576 = vadd.f32 0.0, %v1575
    %v1577 = vpop.f32.mrb[0].mxu0
    %1578 = vmatprep.mubr.f32.mxu0 0.0
    %1579 = vmatmul.mubr.f32.gmra.mrb[0].mxu0 %v1481
    %v1580 = vpop.f32.mrb[0].mxu0
    %v1581 = vadd.f32 0.0, %v1580
    %v1582 = vpop.f32.mrb[0].mxu0
    %1583 = vmatprep.mubr.f32.mxu0 0.0
    %1584 = vmatmul.mubr.f32.gmra.mrb[0].mxu0 %v1484
    %v1585 = vpop.f32.mrb[0].mxu0
    %v1586 = vadd.f32 0.0, %v1585
    %v1587 = vpop.f32.mrb[0].mxu0
    %1588 = vdwg.mxu0
    %v1589 = vmul.f32 %v1556, %v41
    %v1590 = vmul.f32 %v1561, %v41
    %v1591 = vmul.f32 %v1566, %v41
    %v1592 = vmul.f32 %v1571, %v41
    %v1593 = vmul.f32 %v1576, %v41
    %v1594 = vmul.f32 %v1581, %v41
    %v1595 = vmul.f32 %v1586, %v41
    %1596 = vadd.xlane.f32.xlu0 %v1589
    %v1597 = vpop.xlane.xlu0 %1596
    %1598 = vadd.xlane.f32.xlu0 %v1590
    %v1599 = vpop.xlane.xlu0 %1598
    %1600 = vadd.xlane.f32.xlu0 %v1591
    %v1601 = vpop.xlane.xlu0 %1600
    %1602 = vadd.xlane.f32.xlu0 %v1592
    %v1603 = vpop.xlane.xlu0 %1602
    %1604 = vadd.xlane.f32.xlu0 %v1593
    %v1605 = vpop.xlane.xlu0 %1604
    %1606 = vadd.xlane.f32.xlu0 %v1594
    %v1607 = vpop.xlane.xlu0 %1606
    %vm1608 = vcmask 1041408
    %v1609 = vsel %vm1608, %v1595, 0.0
    %1610 = vadd.xlane.f32.xlu0 %v1609
    %v1611 = vpop.xlane.xlu0 %1610
    %v1612 = vmul.f32 %v1597, 0.125
    %v1613 = vmul.f32 %v1599, 0.125
    %v1614 = vmul.f32 %v1601, 0.125
    %v1615 = vmul.f32 %v1603, 0.125
    %v1616 = vmul.f32 %v1605, 0.125
    %v1617 = vmul.f32 %v1607, 0.125
    %v1618 = vmul.f32 %v1611, 0.125
    %v1619 = vsub.f32 %v1556, %v1612
    %v1620 = vsub.f32 %v1561, %v1613
    %v1621 = vsub.f32 %v1566, %v1614
    %v1622 = vsub.f32 %v1571, %v1615
    %v1623 = vsub.f32 %v1576, %v1616
    %v1624 = vsub.f32 %v1581, %v1617
    %v1625 = vsub.f32 %v1586, %v1618
    %v1626 = vmul.f32 %v1619, %v41
    %v1627 = vmul.f32 %v1620, %v41
    %v1628 = vmul.f32 %v1621, %v41
    %v1629 = vmul.f32 %v1622, %v41
    %v1630 = vmul.f32 %v1623, %v41
    %v1631 = vmul.f32 %v1624, %v41
    %v1632 = vmul.f32 %v1625, %v41
    %v1633 = vmul.f32 %v1626, %v1626
    %v1634 = vmul.f32 %v1627, %v1627
    %v1635 = vmul.f32 %v1628, %v1628
    %v1636 = vmul.f32 %v1629, %v1629
    %v1637 = vmul.f32 %v1630, %v1630
    %v1638 = vmul.f32 %v1631, %v1631
    %v1639 = vmul.f32 %v1632, %v1632
    %1640 = vadd.xlane.f32.xlu0 %v1633
    %v1641 = vpop.xlane.xlu0 %1640
    %1642 = vadd.xlane.f32.xlu0 %v1634
    %v1643 = vpop.xlane.xlu0 %1642
    %1644 = vadd.xlane.f32.xlu0 %v1635
    %v1645 = vpop.xlane.xlu0 %1644
    %1646 = vadd.xlane.f32.xlu0 %v1636
    %v1647 = vpop.xlane.xlu0 %1646
    %1648 = vadd.xlane.f32.xlu0 %v1637
    %v1649 = vpop.xlane.xlu0 %1648
    %1650 = vadd.xlane.f32.xlu0 %v1638
    %v1651 = vpop.xlane.xlu0 %1650
    %v1652 = vsel %vm1608, %v1639, 0.0
    %1653 = vadd.xlane.f32.xlu0 %v1652
    %v1654 = vpop.xlane.xlu0 %1653
    %v1655 = vmul.f32 %v1641, 0.125
    %v1656 = vmul.f32 %v1643, 0.125
    %v1657 = vmul.f32 %v1645, 0.125
    %v1658 = vmul.f32 %v1647, 0.125
    %v1659 = vmul.f32 %v1649, 0.125
    %v1660 = vmul.f32 %v1651, 0.125
    %v1661 = vmul.f32 %v1654, 0.125
    %v1662 = vadd.f32 %v1655, 1e-05
    %v1663 = vadd.f32 %v1656, 1e-05
    %v1664 = vadd.f32 %v1657, 1e-05
    %v1665 = vadd.f32 %v1658, 1e-05
    %v1666 = vadd.f32 %v1659, 1e-05
    %v1667 = vadd.f32 %v1660, 1e-05
    %v1668 = vadd.f32 %v1661, 1e-05
    %v1669 = vrsqrt.pop %v1662
    %v1670 = vrsqrt.pop %v1663
    %v1671 = vrsqrt.pop %v1664
    %v1672 = vrsqrt.pop %v1665
    %v1673 = vrsqrt.pop %v1666
    %v1674 = vrsqrt.pop %v1667
    %v1675 = vrsqrt.pop %v1668
    %v1676 = vmul.f32 %v18, %v1669
    %v1677 = vmul.f32 %v19, %v1670
    %v1678 = vmul.f32 %v20, %v1671
    %v1679 = vmul.f32 %v21, %v1672
    %v1680 = vmul.f32 %v22, %v1673
    %v1681 = vmul.f32 %v23, %v1674
    %v1682 = vmul.f32 %v24, %v1675
    %1684 = vset.pattern.permute.xlu0 19
    %1685 = vperm.xlu0 %1684, %v1676
    %v1686 = vpop.permute.xlu0 %1685
    %1689 = vset.pattern.permute.xlu0 19
    %1690 = vperm.xlu0 %1689, %v1677
    %v1691 = vpop.permute.xlu0 %1690
    %1694 = vset.pattern.permute.xlu0 19
    %1695 = vperm.xlu0 %1694, %v1678
    %v1696 = vpop.permute.xlu0 %1695
    %1699 = vset.pattern.permute.xlu0 19
    %1700 = vperm.xlu0 %1699, %v1679
    %v1701 = vpop.permute.xlu0 %1700
    %1704 = vset.pattern.permute.xlu0 19
    %1705 = vperm.xlu0 %1704, %v1680
    %v1706 = vpop.permute.xlu0 %1705
    %1709 = vset.pattern.permute.xlu0 19
    %1710 = vperm.xlu0 %1709, %v1681
    %v1711 = vpop.permute.xlu0 %1710
    %1714 = vset.pattern.permute.xlu0 19
    %1715 = vperm.xlu0 %1714, %v1682
    %v1716 = vpop.permute.xlu0 %1715
    %v1718 = vmul.f32 %v1619, %v1686
    %v1719 = vmul.f32 %v1620, %v1691
    %v1720 = vmul.f32 %v1621, %v1696
    %v1721 = vmul.f32 %v1622, %v1701
    %v1722 = vmul.f32 %v1623, %v1706
    %v1723 = vmul.f32 %v1624, %v1711
    %v1724 = vmul.f32 %v1625, %v1716
    %1725 = vset.pattern.permute.xlu0 20
    %1726 = vperm.xlu0 %1725, %v18
    %v1727 = vpop.permute.xlu0 %1726
    %1729 = vset.pattern.permute.xlu0 20
    %1730 = vperm.xlu0 %1729, %v19
    %v1731 = vpop.permute.xlu0 %1730
    %1733 = vset.pattern.permute.xlu0 20
    %1734 = vperm.xlu0 %1733, %v20
    %v1735 = vpop.permute.xlu0 %1734
    %1737 = vset.pattern.permute.xlu0 20
    %1738 = vperm.xlu0 %1737, %v21
    %v1739 = vpop.permute.xlu0 %1738
    %1741 = vset.pattern.permute.xlu0 20
    %1742 = vperm.xlu0 %1741, %v22
    %v1743 = vpop.permute.xlu0 %1742
    %1745 = vset.pattern.permute.xlu0 20
    %1746 = vperm.xlu0 %1745, %v23
    %v1747 = vpop.permute.xlu0 %1746
    %1749 = vset.pattern.permute.xlu0 20
    %1750 = vperm.xlu0 %1749, %v24
    %v1751 = vpop.permute.xlu0 %1750
    %v1753 = vadd.f32 %v1718, %v1727
    %v1754 = vadd.f32 %v1719, %v1731
    %v1755 = vadd.f32 %v1720, %v1735
    %v1756 = vadd.f32 %v1721, %v1739
    %v1757 = vadd.f32 %v1722, %v1743
    %v1758 = vadd.f32 %v1723, %v1747
    %v1759 = vadd.f32 %v1724, %v1751
    %vm1760 = vcmp.gt.f32.partialorder %v1753, 0.0
    %vm1761 = vcmp.gt.f32.partialorder %v1754, 0.0
    %vm1762 = vcmp.gt.f32.partialorder %v1755, 0.0
    %vm1763 = vcmp.gt.f32.partialorder %v1756, 0.0
    %vm1764 = vcmp.gt.f32.partialorder %v1757, 0.0
    %vm1765 = vcmp.gt.f32.partialorder %v1758, 0.0
    %vm1766 = vcmp.gt.f32.partialorder %v1759, 0.0
    %v1767 = vmul.f32 %v1753, 1.442695
    %v1768 = vpow.pop %v1767
    %v1769 = vmul.f32 %v1754, 1.442695
    %v1770 = vpow.pop %v1769
    %v1771 = vmul.f32 %v1755, 1.442695
    %v1772 = vpow.pop %v1771
    %v1773 = vmul.f32 %v1756, 1.442695
    %v1774 = vpow.pop %v1773
    %v1775 = vmul.f32 %v1757, 1.442695
    %v1776 = vpow.pop %v1775
    %v1777 = vmul.f32 %v1758, 1.442695
    %v1778 = vpow.pop %v1777
    %v1779 = vmul.f32 %v1759, 1.442695
    %v1780 = vpow.pop %v1779
    %v1781 = vsub.f32 %v1768, 1.0
    %v1782 = vsub.f32 %v1770, 1.0
    %v1783 = vsub.f32 %v1772, 1.0
    %v1784 = vsub.f32 %v1774, 1.0
    %v1785 = vsub.f32 %v1776, 1.0
    %v1786 = vsub.f32 %v1778, 1.0
    %v1787 = vsub.f32 %v1780, 1.0
    %v1788 = vsel %vm1760, %v1753, %v1781
    %v1789 = vsel %vm1761, %v1754, %v1782
    %v1790 = vsel %vm1762, %v1755, %v1783
    %v1791 = vsel %vm1763, %v1756, %v1784
    %v1792 = vsel %vm1764, %v1757, %v1785
    %v1793 = vsel %vm1765, %v1758, %v1786
    %v1794 = vsel %vm1766, %v1759, %v1787
    %1795 = vset.pattern.permute.xlu0 21
    %1796 = vperm.xlu0 %1795, %v18
    %v1797 = vpop.permute.xlu0 %1796
    %1799 = vset.pattern.permute.xlu0 21
    %1800 = vperm.xlu0 %1799, %v19
    %v1801 = vpop.permute.xlu0 %1800
    %1803 = vset.pattern.permute.xlu0 21
    %1804 = vperm.xlu0 %1803, %v20
    %v1805 = vpop.permute.xlu0 %1804
    %1807 = vset.pattern.permute.xlu0 21
    %1808 = vperm.xlu0 %1807, %v21
    %v1809 = vpop.permute.xlu0 %1808
    %1811 = vset.pattern.permute.xlu0 21
    %1812 = vperm.xlu0 %1811, %v22
    %v1813 = vpop.permute.xlu0 %1812
    %1815 = vset.pattern.permute.xlu0 21
    %1816 = vperm.xlu0 %1815, %v23
    %v1817 = vpop.permute.xlu0 %1816
    %1819 = vset.pattern.permute.xlu0 21
    %1820 = vperm.xlu0 %1819, %v24
    %v1821 = vpop.permute.xlu0 %1820
    %v1823 = vmul.f32 %v1788, %v1797
    %v1824 = vmul.f32 %v1789, %v1801
    %v1825 = vmul.f32 %v1790, %v1805
    %v1826 = vmul.f32 %v1791, %v1809
    %v1827 = vmul.f32 %v1792, %v1813
    %v1828 = vmul.f32 %v1793, %v1817
    %v1829 = vmul.f32 %v1794, %v1821
    %v1830 = vadd.f32 %v1823, %v1824
    %v1831 = vadd.f32 %v1830, %v1825
    %v1832 = vadd.f32 %v1831, %v1826
    %v1833 = vadd.f32 %v1832, %v1827
    %v1834 = vadd.f32 %v1833, %v1828
    %v1835 = vsel %vm1608, %v1829, 0.0
    %v1836 = vadd.f32 %v1834, %v1835
    %v1837 = vrot.slane %v1836, 4
    %v1838 = vadd.f32 %v1836, %v1837
    %v1839 = vrot.slane %v1838, 2
    %v1840 = vadd.f32 %v1838, %v1839
    %v1841 = vrot.slane %v1840, 1
    %v1842 = vadd.f32 %v1840, %v1841
    %1843 = vset.pattern.permute.xlu0 22
    %1844 = vperm.xlu0 %1843, %v18
    %v1845 = vpop.permute.xlu0 %1844
    %v1847 = vadd.f32 %v1842, %v1845
    %v1848 = vsub.f32 0.0, %v1847
    %v1849 = vmul.f32 %v1848, 1.442695
    %v1850 = vpow.pop %v1849
    %v1851 = vadd.f32 %v1850, 1.0
    %v1852 = vrcp.pop %v1851
    %v1853 = vmul.f32 1.0, %v1852
    %1854 = vst [vmem:[#allocation2] sm:$0x1] %v1853
    // Predicated region
    $region18: #{tpu_custom_call.1} parent=1 // pred_check
      _
    $region19: #{tpu_custom_call.1} parent=1 // pred_check_branch
      %1856 = sbr.rel (0) target = $region21
    $region20: #{tpu_custom_call.1} parent=1 // pred_region
      %s1858 = ssub.s32 16, 16
      %1859 = vsyncadd [#allocation3], %s1858
      %s1861 = sshll.u32 [#allocation2], 4
      %s1862 = int_to_ptr.vmem [resolvable:$true] %s1861
      %1864 = dma.vmem_to_hbm [thread:$0]  %s1862, 16, %s4, [#allocation3]
    $region21: #{tpu_custom_call.1} parent=1 // pred_fallthru
      _
    // Predicated region
    $region22: #{tpu_custom_call.1} parent=1 // pred_check
      _
    $region23: #{tpu_custom_call.1} parent=1 // pred_check_branch
      %1866 = sbr.rel (0) target = $region25
    $region24: #{tpu_custom_call.1} parent=1 // pred_region
      %1867 = dma.done [#allocation3], 16
    $region25: #{tpu_custom_call.1} parent=1 // pred_fallthru
      _
    %1868 = vsyncpa [#allocation3], 1

</llo_original>
